<compile_context>
chip_gen: v5e
topology: v5e:2x2
jax: 0.10.0
libtpu: 0.0.40
codegen_flags: <defaults>
</compile_context>

<pallas_src>
import functools

import jax
import jax.numpy as jnp
import numpy as np
from jax.experimental import pallas as pl
from jax.experimental.pallas import tpu as pltpu


# ----------------------------- Pallas kernel --------------------------------
def _layer_norm_1pass(y, g, b, eps):
    """LayerNorm over the last axis, single pass.

    Anchors on column 0 so mean and sum-of-squares are two independent
    reductions over the same data (they pipeline together) without the
    catastrophic cancellation E[y^2] - mu^2 would suffer on rows with a large
    common offset (e.g. pad rows filled with -100)."""
    inv_h = 1.0 / y.shape[-1]
    c = y[:, :1]                                           # (M, 1) row anchor
    d = y - c
    s1 = jnp.sum(d, axis=-1, keepdims=True) * inv_h        # E[d]
    s2 = jnp.sum(d * d, axis=-1, keepdims=True) * inv_h    # E[d^2]
    var = s2 - s1 * s1                                     # == Var(y)
    return (d - s1) * jax.lax.rsqrt(var + eps) * g + b     # (y - mean)/std


def _encoder_stack_kernel(
    x_in_ref, mbias_ref,
    wq_ref, bq_ref, wk_ref, bk_ref, wv_ref, bv_ref, wo_ref, bo_ref,
    g1_ref, be1_ref, w1_ref, b1_ref, w2_ref, b2_ref, g2_ref, be2_ref,
    out_ref,
    ctx_vmem,
    *, bt, seq_len, n_heads, head_dim, hid_dim, inv_scale, eps, use_bf16):
    l = pl.program_id(1)
    cdt = jnp.bfloat16 if use_bf16 else jnp.float32   # MXU operand dtype

    # Layer 0: seed the carry.  The output block index is constant across the
    # (arbitrary) layer axis, so out_ref stays VMEM-resident for all layers
    # and is written back to HBM only after the last one.
    @pl.when(l == 0)
    def _():
        out_ref[...] = x_in_ref[...].astype(out_ref.dtype)

    x = out_ref[...]                        # (M, H) f32 carry, M = bt*seq_len
    xc = x.astype(cdt)
    mbias = mbias_ref[...]                  # (bt, 1, S) additive key-mask bias

    # ---------------- multi-head self-attention ----------------
    # Full-width projections (N = H fills the MXU); Q scaled once here instead
    # of scaling every (S,S) energy tile.
    q = (jnp.dot(xc, wq_ref[...], preferred_element_type=jnp.float32)
         + bq_ref[...]) * inv_scale
    k = jnp.dot(xc, wk_ref[...], preferred_element_type=jnp.float32) + bk_ref[...]
    v = jnp.dot(xc, wv_ref[...], preferred_element_type=jnp.float32) + bv_ref[...]

    # Per-head (S,S) attention core (static loop: n_heads is small in this
    # module; temporaries per head die after the ctx store so live ranges stay
    # bounded).  ctx slices are assembled into an (M,H) scratch so the output
    # projection is one full-width matmul instead of n_heads K=head_dim ones.
    for h in range(n_heads):
        c0, c1 = h * head_dim, (h + 1) * head_dim
        q3 = q[:, c0:c1].reshape(bt, seq_len, head_dim)
        k3 = k[:, c0:c1].reshape(bt, seq_len, head_dim)
        v3 = v[:, c0:c1].reshape(bt, seq_len, head_dim)
        e = jnp.einsum("bqd,bkd->bqk", q3.astype(cdt), k3.astype(cdt),
                       preferred_element_type=jnp.float32) + mbias  # (bt,S,S)
        m = jnp.max(e, axis=-1, keepdims=True)
        p = jnp.exp(e - m)
        denom = jnp.sum(p, axis=-1, keepdims=True)
        p = p * pl.reciprocal(denom, approx=use_bf16)               # EUP
        ctx = jnp.einsum("bqk,bkd->bqd", p.astype(cdt), v3.astype(cdt),
                         preferred_element_type=jnp.float32)
        ctx_vmem[:, c0:c1] = ctx.reshape(bt * seq_len, head_dim)

    # single full-width output projection
    attn = (jnp.dot(ctx_vmem[...].astype(cdt), wo_ref[...],
                    preferred_element_type=jnp.float32) + bo_ref[...])

    # ---------------- residual + LayerNorm 1 ----------------
    y = _layer_norm_1pass(x + attn, g1_ref[...], be1_ref[...], eps)

    # ---------------- positionwise feed-forward ----------------
    h1 = jnp.maximum(
        jnp.dot(y.astype(cdt), w1_ref[...], preferred_element_type=jnp.float32)
        + b1_ref[...], 0.0)
    ff = (jnp.dot(h1.astype(cdt), w2_ref[...], preferred_element_type=jnp.float32)
          + b2_ref[...])

    # ---------------- residual + LayerNorm 2 ----------------
    z = _layer_norm_1pass(y + ff, g2_ref[...], be2_ref[...], eps)
    out_ref[...] = z                        # carry to the next layer


# ----------------------------- wrappers --------------------------------------
_PARAM_NAMES = ["wq", "bq", "wk", "bk", "wv", "bv", "wo", "bo",
                "g1", "be1", "w1", "b1", "w2", "b2", "g2", "be2"]
_WEIGHT_NAMES = {"wq", "wk", "wv", "wo", "w1", "w2"}


def prepare_encoder_params(params, n_heads, use_bf16=True):
    """Stack per-layer params along a leading L axis.  Matmul weights are kept
    full-width (no per-head splitting) and stored in bf16 for the MXU when
    `use_bf16`; biases / LayerNorm params stay f32."""
    del n_heads  # heads are handled inside the kernel now
    wdt = jnp.bfloat16 if use_bf16 else jnp.float32
    stacked = {}
    for n in _PARAM_NAMES:
        dt = wdt if n in _WEIGHT_NAMES else jnp.float32
        stacked[n] = jnp.stack([lp[n] for lp in params["layers"]]).astype(dt)
    return stacked


def _vmem_limit_bytes():
    """Generation-aware VMEM cap: <=75% of physical, never above 100 MiB
    (~48 MiB on v7x's 64 MiB per-TC VMEM, ~96 MiB on v5e/v6e's 128 MiB)."""
    cap = None
    try:
        cap = int(pltpu.get_tpu_info().vmem_capacity_bytes)
    except Exception:
        cap = None
    if not cap or cap <= 0:
        cap = 128 * 1024 * 1024
    return int(min(cap * 3 // 4, 100 * 1024 * 1024))


def encoder_forward(src, stacked, n_heads, pad_id=-100.0, *, batch_block=None):
    """Full Encoder forward (mask construction + fused layer stack)."""
    B, S, H = src.shape
    hd = H // n_heads
    L = stacked["wq"].shape[0]
    PF = stacked["w1"].shape[-1]
    use_bf16 = stacked["wq"].dtype == jnp.bfloat16

    vmem_limit = _vmem_limit_bytes()

    # ---- batch-block sizing: target M = bt*S in the 256-768 row band so the
    # per-layer weight stream is amortised, capped by the VMEM budget.
    if batch_block is None:
        wbytes = 2 if use_bf16 else 4
        layer_w = (4 * H * H + 2 * H * PF) * wbytes        # one layer's matmul weights
        per_row = (8 * H + PF + 4 * n_heads * S) * 4       # rough f32 live bytes / row
        budget = int(vmem_limit * 0.85) - 2 * layer_w - (4 << 20)
        max_rows = max(S, budget // max(per_row, 1))
        target_rows = min(768, max_rows)
        bt = max(1, min(B, target_rows // max(S, 1)))
        # keep >=2 parallel batch blocks (dual-TC v7x) when M stays >= 256 rows
        if B // bt < 2 and bt % 2 == 0 and (bt // 2) * S >= 256:
            bt //= 2
        batch_block = bt
    bt = max(1, min(B, batch_block))
    # block constraints: bt must divide B and bt*S must be sublane-aligned
    # (or equal the full row extent, i.e. bt == B).
    while bt > 1 and not (B % bt == 0 and (bt * S) % 8 == 0):
        bt -= 1
    if not (B % bt == 0 and ((bt * S) % 8 == 0 or bt == B)):
        bt = B
    num_bb = B // bt
    M = bt * S

    # make_src_mask: (src != pad)[..., 0] -> additive key-mask bias (B, 1, S)
    keep = (src[:, :, 0] != pad_id)
    mask_bias = jnp.where(keep, 0.0, -1e10).astype(jnp.float32).reshape(B, 1, S)
    x2 = src.reshape(B * S, H).astype(jnp.float32)   # lane-dense 2-D slab

    kernel = functools.partial(
        _encoder_stack_kernel,
        bt=bt, seq_len=S, n_heads=n_heads, head_dim=hd, hid_dim=H,
        inv_scale=float(1.0 / np.sqrt(hd)), eps=1e-5, use_bf16=use_bf16)

    def wspec(arr):
        # one layer's block; the layer axis is squeezed out of the kernel view
        trailing = tuple(arr.shape[1:])
        nt = len(trailing)
        return pl.BlockSpec((None,) + trailing,
                            lambda bb, l, _nt=nt: (l,) + (0,) * _nt)

    # TODO(synk): on 128-MiB-VMEM parts (v5e/v6e) a full weight-resident
    # variant (constant index_map over L, index with `l` inside the kernel)
    # would remove the per-(bb,l) weight restream entirely.
    in_specs = ([pl.BlockSpec((M, H), lambda bb, l: (bb, 0)),
                 pl.BlockSpec((bt, 1, S), lambda bb, l: (bb, 0, 0))]
                + [wspec(stacked[n]) for n in _PARAM_NAMES])

    out = pl.pallas_call(
        kernel,
        out_shape=jax.ShapeDtypeStruct((B * S, H), jnp.float32),
        grid_spec=pltpu.PrefetchScalarGridSpec(
            num_scalar_prefetch=0,
            grid=(num_bb, L),                       # (batch blocks, layers)
            in_specs=in_specs,
            out_specs=pl.BlockSpec((M, H), lambda bb, l: (bb, 0)),
            scratch_shapes=[pltpu.VMEM((M, H), jnp.float32)]),   # ctx assembly
        compiler_params=pltpu.CompilerParams(
            dimension_semantics=("parallel", "arbitrary"),
            vmem_limit_bytes=vmem_limit),
    )(x2, mask_bias, *[stacked[n] for n in _PARAM_NAMES])

    return out.reshape(B, S, H)


# ----------------------------- params / reference ----------------------------
def init_params(key, hid_dim, n_layers, pf_dim):
    def linear(k, fan_in, fan_out):
        k1, k2 = jax.random.split(k)
        bound = 1.0 / np.sqrt(fan_in)
        w = jax.random.uniform(k1, (fan_in, fan_out), jnp.float32, -bound, bound)
        b = jax.random.uniform(k2, (1, fan_out), jnp.float32, -bound, bound)
        return w, b

    layers = []
    for lk in jax.random.split(key, n_layers):
        ks = jax.random.split(lk, 6)
        wq, bq = linear(ks[0], hid_dim, hid_dim)
        wk, bk = linear(ks[1], hid_dim, hid_dim)
        wv, bv = linear(ks[2], hid_dim, hid_dim)
        wo, bo = linear(ks[3], hid_dim, hid_dim)
        w1, b1 = linear(ks[4], hid_dim, pf_dim)
        w2, b2 = linear(ks[5], pf_dim, hid_dim)
        layers.append(dict(
            wq=wq, bq=bq, wk=wk, bk=bk, wv=wv, bv=bv, wo=wo, bo=bo,
            g1=jnp.ones((1, hid_dim), jnp.float32),
            be1=jnp.zeros((1, hid_dim), jnp.float32),
            w1=w1, b1=b1, w2=w2, b2=b2,
            g2=jnp.ones((1, hid_dim), jnp.float32),
            be2=jnp.zeros((1, hid_dim), jnp.float32)))
    return dict(layers=layers)


def _ref_layer_norm(x, g, b, eps=1e-5):
    mu = jnp.mean(x, axis=-1, keepdims=True)
    var = jnp.mean((x - mu) ** 2, axis=-1, keepdims=True)
    return (x - mu) / jnp.sqrt(var + eps) * g + b


def ref_encoder(src, params, n_heads, pad_id=-100.0):
    """Pure-JAX f32 reference with the PyTorch module's exact semantics."""
    B, S, H = src.shape
    hd = H // n_heads
    mask = (src[:, :, 0] != pad_id)
    x = src
    for lp in params["layers"]:
        q = x @ lp["wq"] + lp["bq"]
        k = x @ lp["wk"] + lp["bk"]
        v = x @ lp["wv"] + lp["bv"]
        qh = q.reshape(B, S, n_heads, hd).transpose(0, 2, 1, 3)
        kh = k.reshape(B, S, n_heads, hd).transpose(0, 2, 1, 3)
        vh = v.reshape(B, S, n_heads, hd).transpose(0, 2, 1, 3)
        e = jnp.einsum("bhqd,bhkd->bhqk", qh, kh) / jnp.sqrt(float(hd))
        e = jnp.where(mask[:, None, None, :], e, -1e10)
        a = jax.nn.softmax(e, axis=-1)
        ctx = jnp.einsum("bhqk,bhkd->bhqd", a, vh).transpose(0, 2, 1, 3).reshape(B, S, H)
        attn_out = ctx @ lp["wo"] + lp["bo"]
        y = _ref_layer_norm(x + attn_out, lp["g1"], lp["be1"])
        ff = jnp.maximum(y @ lp["w1"] + lp["b1"], 0.0) @ lp["w2"] + lp["b2"]
        x = _ref_layer_norm(y + ff, lp["g2"], lp["be2"])
    return x


# ----------------------------- main -------------------------------------------
if __name__ == "__main__":
    B, S, H, N_HEADS, PF, N_LAYERS = 2, 8, 32, 4, 64, 2
    PAD = -100.0

    key = jax.random.PRNGKey(0)
    kp, kx = jax.random.split(key)
    params = init_params(kp, H, N_LAYERS, PF)

    src = jax.random.normal(kx, (B, S, H), jnp.float32)
    # mark the last two positions of batch 1 as pad tokens (value == pad_id)
    src = src.at[1, S - 2:, :].set(PAD)

    ref = np.asarray(ref_encoder(src, params, N_HEADS, PAD))

    # ---- exact f32 path: must match the PyTorch-semantics reference tightly.
    stacked_f32 = prepare_encoder_params(params, N_HEADS, use_bf16=False)
    out_f32 = jax.block_until_ready(encoder_forward(src, stacked_f32, N_HEADS, PAD))
    np.testing.assert_allclose(np.asarray(out_f32), ref, rtol=1e-4, atol=1e-4)

    # ---- fast bf16-MXU path: compare on valid (non-pad) positions with a
    #      bf16-level tolerance (pad rows hold arbitrary -100 garbage that is
    #      ignored downstream and would amplify bf16 rounding in the logits).
    stacked_bf16 = prepare_encoder_params(params, N_HEADS, use_bf16=True)
    out_bf16 = jax.block_until_ready(encoder_forward(src, stacked_bf16, N_HEADS, PAD))
    valid = np.asarray(src[:, :, 0] != PAD)          # (B, S)
    np.testing.assert_allclose(np.asarray(out_bf16)[valid], ref[valid],
                               rtol=3e-2, atol=3e-2)

    print("KERNEL_OK")
</pallas_src>

<mosaic_0001>
module attributes {stable_mosaic.version = 11 : i64} {
  func.func @_encoder_stack_kernel(%arg0: i32, %arg1: i32, %arg2: memref<16x32xf32, #tpu.memory_space<vmem>>, %arg3: memref<2x1x8xf32, #tpu.memory_space<vmem>>, %arg4: memref<1x32x32xf32, #tpu.memory_space<vmem>>, %arg5: memref<1x1x32xf32, #tpu.memory_space<vmem>>, %arg6: memref<1x32x32xf32, #tpu.memory_space<vmem>>, %arg7: memref<1x1x32xf32, #tpu.memory_space<vmem>>, %arg8: memref<1x32x32xf32, #tpu.memory_space<vmem>>, %arg9: memref<1x1x32xf32, #tpu.memory_space<vmem>>, %arg10: memref<1x32x32xf32, #tpu.memory_space<vmem>>, %arg11: memref<1x1x32xf32, #tpu.memory_space<vmem>>, %arg12: memref<1x1x32xf32, #tpu.memory_space<vmem>>, %arg13: memref<1x1x32xf32, #tpu.memory_space<vmem>>, %arg14: memref<1x32x64xf32, #tpu.memory_space<vmem>>, %arg15: memref<1x1x64xf32, #tpu.memory_space<vmem>>, %arg16: memref<1x64x32xf32, #tpu.memory_space<vmem>>, %arg17: memref<1x1x32xf32, #tpu.memory_space<vmem>>, %arg18: memref<1x1x32xf32, #tpu.memory_space<vmem>>, %arg19: memref<1x1x32xf32, #tpu.memory_space<vmem>>, %arg20: memref<16x32xf32, #tpu.memory_space<vmem>>, %arg21: memref<16x32xf32, #tpu.memory_space<vmem>>) attributes {dimension_semantics = [#tpu.dimension_semantics<parallel>, #tpu.dimension_semantics<arbitrary>], iteration_bounds = array<i64: 1, 2>, scalar_prefetch = 0 : i64, scratch_operands = 1 : i64, tpu.core_type = #tpu.core_type<tc>, window_params = [{transform_indices = @transform_0, window_bounds = array<i64: 16, 32>}, {transform_indices = @transform_1, window_bounds = array<i64: 2, 1, 8>}, {transform_indices = @transform_2, window_bounds = array<i64: 1, 32, 32>}, {transform_indices = @transform_3, window_bounds = array<i64: 1, 1, 32>}, {transform_indices = @transform_4, window_bounds = array<i64: 1, 32, 32>}, {transform_indices = @transform_5, window_bounds = array<i64: 1, 1, 32>}, {transform_indices = @transform_6, window_bounds = array<i64: 1, 32, 32>}, {transform_indices = @transform_7, window_bounds = array<i64: 1, 1, 32>}, {transform_indices = @transform_8, window_bounds = array<i64: 1, 32, 32>}, {transform_indices = @transform_9, window_bounds = array<i64: 1, 1, 32>}, {transform_indices = @transform_10, window_bounds = array<i64: 1, 1, 32>}, {transform_indices = @transform_11, window_bounds = array<i64: 1, 1, 32>}, {transform_indices = @transform_12, window_bounds = array<i64: 1, 32, 64>}, {transform_indices = @transform_13, window_bounds = array<i64: 1, 1, 64>}, {transform_indices = @transform_14, window_bounds = array<i64: 1, 64, 32>}, {transform_indices = @transform_15, window_bounds = array<i64: 1, 1, 32>}, {transform_indices = @transform_16, window_bounds = array<i64: 1, 1, 32>}, {transform_indices = @transform_17, window_bounds = array<i64: 1, 1, 32>}, {transform_indices = @transform_18, window_bounds = array<i64: 16, 32>}]} {
    %c0_i32 = arith.constant 0 : i32
    %0 = arith.cmpi eq, %arg1, %c0_i32 : i32
    %1 = arith.extui %0 : i1 to i32
    %c0_i32_0 = arith.constant 0 : i32
    %2 = arith.cmpi ne, %1, %c0_i32_0 : i32
    scf.if %2 {
      %c0_95 = arith.constant 0 : index
      %c0_96 = arith.constant 0 : index
      %201 = vector.load %arg2[%c0_95, %c0_96] : memref<16x32xf32, #tpu.memory_space<vmem>>, vector<16x32xf32>
      %c0_97 = arith.constant 0 : index
      %c0_98 = arith.constant 0 : index
      %202 = vector.load %arg20[%c0_97, %c0_98] : memref<16x32xf32, #tpu.memory_space<vmem>>, vector<16x32xf32>
      tpu.vector_store %arg20[%c0_97, %c0_98], %201 {strides = array<i32>} : memref<16x32xf32, #tpu.memory_space<vmem>>, vector<16x32xf32>,
    } else {
    }
    %c0 = arith.constant 0 : index
    %c0_1 = arith.constant 0 : index
    %3 = vector.load %arg20[%c0, %c0_1] : memref<16x32xf32, #tpu.memory_space<vmem>>, vector<16x32xf32>
    %c0_2 = arith.constant 0 : index
    %c0_3 = arith.constant 0 : index
    %c0_4 = arith.constant 0 : index
    %4 = vector.load %arg3[%c0_2, %c0_3, %c0_4] : memref<2x1x8xf32, #tpu.memory_space<vmem>>, vector<2x1x8xf32>
    %c0_5 = arith.constant 0 : index
    %c0_6 = arith.constant 0 : index
    %c0_7 = arith.constant 0 : index
    %5 = vector.load %arg4[%c0_5, %c0_6, %c0_7] : memref<1x32x32xf32, #tpu.memory_space<vmem>>, vector<1x32x32xf32>
    %6 = vector.shape_cast %5 : vector<1x32x32xf32> to vector<32x32xf32>
    %cst = arith.constant dense<0.000000e+00> : vector<16x32xf32>
    %7 = tpu.matmul %3, %6, %cst {dimension_numbers = #tpu.dot_dimension_numbers<[1], [0], [0], [1], [0, 0, 1, 1], [], []>} : vector<16x32xf32>, vector<32x32xf32>, vector<16x32xf32> -> vector<16x32xf32>
    %c0_8 = arith.constant 0 : index
    %c0_9 = arith.constant 0 : index
    %c0_10 = arith.constant 0 : index
    %8 = vector.load %arg5[%c0_8, %c0_9, %c0_10] : memref<1x1x32xf32, #tpu.memory_space<vmem>>, vector<1x1x32xf32>
    %9 = vector.shape_cast %8 : vector<1x1x32xf32> to vector<1x32xf32>
    %10 = vector.broadcast %9 : vector<1x32xf32> to vector<16x32xf32>
    %11 = arith.addf %7, %10 : vector<16x32xf32>
    %cst_11 = arith.constant 0.353553385 : f32
    %12 = vector.broadcast %cst_11 : f32 to vector<16x32xf32>
    %13 = arith.mulf %11, %12 : vector<16x32xf32>
    %c0_12 = arith.constant 0 : index
    %c0_13 = arith.constant 0 : index
    %c0_14 = arith.constant 0 : index
    %14 = vector.load %arg6[%c0_12, %c0_13, %c0_14] : memref<1x32x32xf32, #tpu.memory_space<vmem>>, vector<1x32x32xf32>
    %15 = vector.shape_cast %14 : vector<1x32x32xf32> to vector<32x32xf32>
    %cst_15 = arith.constant dense<0.000000e+00> : vector<16x32xf32>
    %16 = tpu.matmul %3, %15, %cst_15 {dimension_numbers = #tpu.dot_dimension_numbers<[1], [0], [0], [1], [0, 0, 1, 1], [], []>} : vector<16x32xf32>, vector<32x32xf32>, vector<16x32xf32> -> vector<16x32xf32>
    %c0_16 = arith.constant 0 : index
    %c0_17 = arith.constant 0 : index
    %c0_18 = arith.constant 0 : index
    %17 = vector.load %arg7[%c0_16, %c0_17, %c0_18] : memref<1x1x32xf32, #tpu.memory_space<vmem>>, vector<1x1x32xf32>
    %18 = vector.shape_cast %17 : vector<1x1x32xf32> to vector<1x32xf32>
    %19 = vector.broadcast %18 : vector<1x32xf32> to vector<16x32xf32>
    %20 = arith.addf %16, %19 : vector<16x32xf32>
    %c0_19 = arith.constant 0 : index
    %c0_20 = arith.constant 0 : index
    %c0_21 = arith.constant 0 : index
    %21 = vector.load %arg8[%c0_19, %c0_20, %c0_21] : memref<1x32x32xf32, #tpu.memory_space<vmem>>, vector<1x32x32xf32>
    %22 = vector.shape_cast %21 : vector<1x32x32xf32> to vector<32x32xf32>
    %cst_22 = arith.constant dense<0.000000e+00> : vector<16x32xf32>
    %23 = tpu.matmul %3, %22, %cst_22 {dimension_numbers = #tpu.dot_dimension_numbers<[1], [0], [0], [1], [0, 0, 1, 1], [], []>} : vector<16x32xf32>, vector<32x32xf32>, vector<16x32xf32> -> vector<16x32xf32>
    %c0_23 = arith.constant 0 : index
    %c0_24 = arith.constant 0 : index
    %c0_25 = arith.constant 0 : index
    %24 = vector.load %arg9[%c0_23, %c0_24, %c0_25] : memref<1x1x32xf32, #tpu.memory_space<vmem>>, vector<1x1x32xf32>
    %25 = vector.shape_cast %24 : vector<1x1x32xf32> to vector<1x32xf32>
    %26 = vector.broadcast %25 : vector<1x32xf32> to vector<16x32xf32>
    %27 = arith.addf %23, %26 : vector<16x32xf32>
    %28 = vector.extract_strided_slice %13 {offsets = [0, 0], sizes = [16, 8], strides = [1, 1]} : vector<16x32xf32> to vector<16x8xf32>
    %29 = vector.shape_cast %28 : vector<16x8xf32> to vector<2x8x8xf32>
    %30 = vector.extract_strided_slice %20 {offsets = [0, 0], sizes = [16, 8], strides = [1, 1]} : vector<16x32xf32> to vector<16x8xf32>
    %31 = vector.shape_cast %30 : vector<16x8xf32> to vector<2x8x8xf32>
    %32 = vector.extract_strided_slice %27 {offsets = [0, 0], sizes = [16, 8], strides = [1, 1]} : vector<16x32xf32> to vector<16x8xf32>
    %33 = vector.shape_cast %32 : vector<16x8xf32> to vector<2x8x8xf32>
    "tpu.trace_start"() <{level = 10 : i32, message = "bqd,bkd->bqk"}> : () -> ()
    %cst_26 = arith.constant dense<0.000000e+00> : vector<2x8x8xf32>
    %34 = tpu.matmul %29, %31, %cst_26 {dimension_numbers = #tpu.dot_dimension_numbers<[2], [2], [1], [1], [0, 0, 0, 1, 1, 1], [0], [0]>} : vector<2x8x8xf32>, vector<2x8x8xf32>, vector<2x8x8xf32> -> vector<2x8x8xf32>
    "tpu.trace_stop"() : () -> ()
    %35 = vector.broadcast %4 : vector<2x1x8xf32> to vector<2x8x8xf32>
    %36 = arith.addf %34, %35 : vector<2x8x8xf32>
    %cst_27 = arith.constant dense<0xFF800000> : vector<2x8xf32>
    %37 = vector.multi_reduction <maximumf>, %36, %cst_27 [2] : vector<2x8x8xf32> to vector<2x8xf32>
    %38 = vector.shape_cast %37 : vector<2x8xf32> to vector<2x8x1xf32>
    %39 = vector.broadcast %38 : vector<2x8x1xf32> to vector<2x8x8xf32>
    %40 = arith.subf %36, %39 : vector<2x8x8xf32>
    %41 = math.exp %40 : vector<2x8x8xf32>
    %cst_28 = arith.constant dense<0.000000e+00> : vector<2x8xf32>
    %42 = vector.multi_reduction <add>, %41, %cst_28 [2] : vector<2x8x8xf32> to vector<2x8xf32>
    %43 = vector.shape_cast %42 : vector<2x8xf32> to vector<2x8x1xf32>
    %44 = tpu.reciprocal %43 : vector<2x8x1xf32> -> vector<2x8x1xf32>
    %45 = vector.broadcast %44 : vector<2x8x1xf32> to vector<2x8x8xf32>
    %46 = arith.mulf %41, %45 : vector<2x8x8xf32>
    "tpu.trace_start"() <{level = 10 : i32, message = "bqk,bkd->bqd"}> : () -> ()
    %cst_29 = arith.constant dense<0.000000e+00> : vector<2x8x8xf32>
    %47 = tpu.matmul %46, %33, %cst_29 {dimension_numbers = #tpu.dot_dimension_numbers<[2], [1], [1], [2], [0, 0, 0, 1, 1, 2], [0], [0]>} : vector<2x8x8xf32>, vector<2x8x8xf32>, vector<2x8x8xf32> -> vector<2x8x8xf32>
    "tpu.trace_stop"() : () -> ()
    %48 = vector.shape_cast %47 : vector<2x8x8xf32> to vector<16x8xf32>
    %c0_30 = arith.constant 0 : index
    %c0_31 = arith.constant 0 : index
    %49 = vector.load %arg21[%c0_30, %c0_31] : memref<16x32xf32, #tpu.memory_space<vmem>>, vector<16x8xf32>
    tpu.vector_store %arg21[%c0_30, %c0_31], %48 {strides = array<i32>} : memref<16x32xf32, #tpu.memory_space<vmem>>, vector<16x8xf32>,
    %50 = vector.extract_strided_slice %13 {offsets = [0, 8], sizes = [16, 8], strides = [1, 1]} : vector<16x32xf32> to vector<16x8xf32>
    %51 = vector.shape_cast %50 : vector<16x8xf32> to vector<2x8x8xf32>
    %52 = vector.extract_strided_slice %20 {offsets = [0, 8], sizes = [16, 8], strides = [1, 1]} : vector<16x32xf32> to vector<16x8xf32>
    %53 = vector.shape_cast %52 : vector<16x8xf32> to vector<2x8x8xf32>
    %54 = vector.extract_strided_slice %27 {offsets = [0, 8], sizes = [16, 8], strides = [1, 1]} : vector<16x32xf32> to vector<16x8xf32>
    %55 = vector.shape_cast %54 : vector<16x8xf32> to vector<2x8x8xf32>
    "tpu.trace_start"() <{level = 10 : i32, message = "bqd,bkd->bqk"}> : () -> ()
    %cst_32 = arith.constant dense<0.000000e+00> : vector<2x8x8xf32>
    %56 = tpu.matmul %51, %53, %cst_32 {dimension_numbers = #tpu.dot_dimension_numbers<[2], [2], [1], [1], [0, 0, 0, 1, 1, 1], [0], [0]>} : vector<2x8x8xf32>, vector<2x8x8xf32>, vector<2x8x8xf32> -> vector<2x8x8xf32>
    "tpu.trace_stop"() : () -> ()
    %57 = vector.broadcast %4 : vector<2x1x8xf32> to vector<2x8x8xf32>
    %58 = arith.addf %56, %57 : vector<2x8x8xf32>
    %cst_33 = arith.constant dense<0xFF800000> : vector<2x8xf32>
    %59 = vector.multi_reduction <maximumf>, %58, %cst_33 [2] : vector<2x8x8xf32> to vector<2x8xf32>
    %60 = vector.shape_cast %59 : vector<2x8xf32> to vector<2x8x1xf32>
    %61 = vector.broadcast %60 : vector<2x8x1xf32> to vector<2x8x8xf32>
    %62 = arith.subf %58, %61 : vector<2x8x8xf32>
    %63 = math.exp %62 : vector<2x8x8xf32>
    %cst_34 = arith.constant dense<0.000000e+00> : vector<2x8xf32>
    %64 = vector.multi_reduction <add>, %63, %cst_34 [2] : vector<2x8x8xf32> to vector<2x8xf32>
    %65 = vector.shape_cast %64 : vector<2x8xf32> to vector<2x8x1xf32>
    %66 = tpu.reciprocal %65 : vector<2x8x1xf32> -> vector<2x8x1xf32>
    %67 = vector.broadcast %66 : vector<2x8x1xf32> to vector<2x8x8xf32>
    %68 = arith.mulf %63, %67 : vector<2x8x8xf32>
    "tpu.trace_start"() <{level = 10 : i32, message = "bqk,bkd->bqd"}> : () -> ()
    %cst_35 = arith.constant dense<0.000000e+00> : vector<2x8x8xf32>
    %69 = tpu.matmul %68, %55, %cst_35 {dimension_numbers = #tpu.dot_dimension_numbers<[2], [1], [1], [2], [0, 0, 0, 1, 1, 2], [0], [0]>} : vector<2x8x8xf32>, vector<2x8x8xf32>, vector<2x8x8xf32> -> vector<2x8x8xf32>
    "tpu.trace_stop"() : () -> ()
    %70 = vector.shape_cast %69 : vector<2x8x8xf32> to vector<16x8xf32>
    %c0_36 = arith.constant 0 : index
    %c8 = arith.constant 8 : index
    %71 = vector.load %arg21[%c0_36, %c8] : memref<16x32xf32, #tpu.memory_space<vmem>>, vector<16x8xf32>
    tpu.vector_store %arg21[%c0_36, %c8], %70 {strides = array<i32>} : memref<16x32xf32, #tpu.memory_space<vmem>>, vector<16x8xf32>,
    %72 = vector.extract_strided_slice %13 {offsets = [0, 16], sizes = [16, 8], strides = [1, 1]} : vector<16x32xf32> to vector<16x8xf32>
    %73 = vector.shape_cast %72 : vector<16x8xf32> to vector<2x8x8xf32>
    %74 = vector.extract_strided_slice %20 {offsets = [0, 16], sizes = [16, 8], strides = [1, 1]} : vector<16x32xf32> to vector<16x8xf32>
    %75 = vector.shape_cast %74 : vector<16x8xf32> to vector<2x8x8xf32>
    %76 = vector.extract_strided_slice %27 {offsets = [0, 16], sizes = [16, 8], strides = [1, 1]} : vector<16x32xf32> to vector<16x8xf32>
    %77 = vector.shape_cast %76 : vector<16x8xf32> to vector<2x8x8xf32>
    "tpu.trace_start"() <{level = 10 : i32, message = "bqd,bkd->bqk"}> : () -> ()
    %cst_37 = arith.constant dense<0.000000e+00> : vector<2x8x8xf32>
    %78 = tpu.matmul %73, %75, %cst_37 {dimension_numbers = #tpu.dot_dimension_numbers<[2], [2], [1], [1], [0, 0, 0, 1, 1, 1], [0], [0]>} : vector<2x8x8xf32>, vector<2x8x8xf32>, vector<2x8x8xf32> -> vector<2x8x8xf32>
    "tpu.trace_stop"() : () -> ()
    %79 = vector.broadcast %4 : vector<2x1x8xf32> to vector<2x8x8xf32>
    %80 = arith.addf %78, %79 : vector<2x8x8xf32>
    %cst_38 = arith.constant dense<0xFF800000> : vector<2x8xf32>
    %81 = vector.multi_reduction <maximumf>, %80, %cst_38 [2] : vector<2x8x8xf32> to vector<2x8xf32>
    %82 = vector.shape_cast %81 : vector<2x8xf32> to vector<2x8x1xf32>
    %83 = vector.broadcast %82 : vector<2x8x1xf32> to vector<2x8x8xf32>
    %84 = arith.subf %80, %83 : vector<2x8x8xf32>
    %85 = math.exp %84 : vector<2x8x8xf32>
    %cst_39 = arith.constant dense<0.000000e+00> : vector<2x8xf32>
    %86 = vector.multi_reduction <add>, %85, %cst_39 [2] : vector<2x8x8xf32> to vector<2x8xf32>
    %87 = vector.shape_cast %86 : vector<2x8xf32> to vector<2x8x1xf32>
    %88 = tpu.reciprocal %87 : vector<2x8x1xf32> -> vector<2x8x1xf32>
    %89 = vector.broadcast %88 : vector<2x8x1xf32> to vector<2x8x8xf32>
    %90 = arith.mulf %85, %89 : vector<2x8x8xf32>
    "tpu.trace_start"() <{level = 10 : i32, message = "bqk,bkd->bqd"}> : () -> ()
    %cst_40 = arith.constant dense<0.000000e+00> : vector<2x8x8xf32>
    %91 = tpu.matmul %90, %77, %cst_40 {dimension_numbers = #tpu.dot_dimension_numbers<[2], [1], [1], [2], [0, 0, 0, 1, 1, 2], [0], [0]>} : vector<2x8x8xf32>, vector<2x8x8xf32>, vector<2x8x8xf32> -> vector<2x8x8xf32>
    "tpu.trace_stop"() : () -> ()
    %92 = vector.shape_cast %91 : vector<2x8x8xf32> to vector<16x8xf32>
    %c0_41 = arith.constant 0 : index
    %c16 = arith.constant 16 : index
    %93 = vector.load %arg21[%c0_41, %c16] : memref<16x32xf32, #tpu.memory_space<vmem>>, vector<16x8xf32>
    tpu.vector_store %arg21[%c0_41, %c16], %92 {strides = array<i32>} : memref<16x32xf32, #tpu.memory_space<vmem>>, vector<16x8xf32>,
    %94 = vector.extract_strided_slice %13 {offsets = [0, 24], sizes = [16, 8], strides = [1, 1]} : vector<16x32xf32> to vector<16x8xf32>
    %95 = vector.shape_cast %94 : vector<16x8xf32> to vector<2x8x8xf32>
    %96 = vector.extract_strided_slice %20 {offsets = [0, 24], sizes = [16, 8], strides = [1, 1]} : vector<16x32xf32> to vector<16x8xf32>
    %97 = vector.shape_cast %96 : vector<16x8xf32> to vector<2x8x8xf32>
    %98 = vector.extract_strided_slice %27 {offsets = [0, 24], sizes = [16, 8], strides = [1, 1]} : vector<16x32xf32> to vector<16x8xf32>
    %99 = vector.shape_cast %98 : vector<16x8xf32> to vector<2x8x8xf32>
    "tpu.trace_start"() <{level = 10 : i32, message = "bqd,bkd->bqk"}> : () -> ()
    %cst_42 = arith.constant dense<0.000000e+00> : vector<2x8x8xf32>
    %100 = tpu.matmul %95, %97, %cst_42 {dimension_numbers = #tpu.dot_dimension_numbers<[2], [2], [1], [1], [0, 0, 0, 1, 1, 1], [0], [0]>} : vector<2x8x8xf32>, vector<2x8x8xf32>, vector<2x8x8xf32> -> vector<2x8x8xf32>
    "tpu.trace_stop"() : () -> ()
    %101 = vector.broadcast %4 : vector<2x1x8xf32> to vector<2x8x8xf32>
    %102 = arith.addf %100, %101 : vector<2x8x8xf32>
    %cst_43 = arith.constant dense<0xFF800000> : vector<2x8xf32>
    %103 = vector.multi_reduction <maximumf>, %102, %cst_43 [2] : vector<2x8x8xf32> to vector<2x8xf32>
    %104 = vector.shape_cast %103 : vector<2x8xf32> to vector<2x8x1xf32>
    %105 = vector.broadcast %104 : vector<2x8x1xf32> to vector<2x8x8xf32>
    %106 = arith.subf %102, %105 : vector<2x8x8xf32>
    %107 = math.exp %106 : vector<2x8x8xf32>
    %cst_44 = arith.constant dense<0.000000e+00> : vector<2x8xf32>
    %108 = vector.multi_reduction <add>, %107, %cst_44 [2] : vector<2x8x8xf32> to vector<2x8xf32>
    %109 = vector.shape_cast %108 : vector<2x8xf32> to vector<2x8x1xf32>
    %110 = tpu.reciprocal %109 : vector<2x8x1xf32> -> vector<2x8x1xf32>
    %111 = vector.broadcast %110 : vector<2x8x1xf32> to vector<2x8x8xf32>
    %112 = arith.mulf %107, %111 : vector<2x8x8xf32>
    "tpu.trace_start"() <{level = 10 : i32, message = "bqk,bkd->bqd"}> : () -> ()
    %cst_45 = arith.constant dense<0.000000e+00> : vector<2x8x8xf32>
    %113 = tpu.matmul %112, %99, %cst_45 {dimension_numbers = #tpu.dot_dimension_numbers<[2], [1], [1], [2], [0, 0, 0, 1, 1, 2], [0], [0]>} : vector<2x8x8xf32>, vector<2x8x8xf32>, vector<2x8x8xf32> -> vector<2x8x8xf32>
    "tpu.trace_stop"() : () -> ()
    %114 = vector.shape_cast %113 : vector<2x8x8xf32> to vector<16x8xf32>
    %c0_46 = arith.constant 0 : index
    %c24 = arith.constant 24 : index
    %115 = vector.load %arg21[%c0_46, %c24] : memref<16x32xf32, #tpu.memory_space<vmem>>, vector<16x8xf32>
    tpu.vector_store %arg21[%c0_46, %c24], %114 {strides = array<i32>} : memref<16x32xf32, #tpu.memory_space<vmem>>, vector<16x8xf32>,
    %c0_47 = arith.constant 0 : index
    %c0_48 = arith.constant 0 : index
    %116 = vector.load %arg21[%c0_47, %c0_48] : memref<16x32xf32, #tpu.memory_space<vmem>>, vector<16x32xf32>
    %c0_49 = arith.constant 0 : index
    %c0_50 = arith.constant 0 : index
    %c0_51 = arith.constant 0 : index
    %117 = vector.load %arg10[%c0_49, %c0_50, %c0_51] : memref<1x32x32xf32, #tpu.memory_space<vmem>>, vector<1x32x32xf32>
    %118 = vector.shape_cast %117 : vector<1x32x32xf32> to vector<32x32xf32>
    %cst_52 = arith.constant dense<0.000000e+00> : vector<16x32xf32>
    %119 = tpu.matmul %116, %118, %cst_52 {dimension_numbers = #tpu.dot_dimension_numbers<[1], [0], [0], [1], [0, 0, 1, 1], [], []>} : vector<16x32xf32>, vector<32x32xf32>, vector<16x32xf32> -> vector<16x32xf32>
    %c0_53 = arith.constant 0 : index
    %c0_54 = arith.constant 0 : index
    %c0_55 = arith.constant 0 : index
    %120 = vector.load %arg11[%c0_53, %c0_54, %c0_55] : memref<1x1x32xf32, #tpu.memory_space<vmem>>, vector<1x1x32xf32>
    %121 = vector.shape_cast %120 : vector<1x1x32xf32> to vector<1x32xf32>
    %122 = vector.broadcast %121 : vector<1x32xf32> to vector<16x32xf32>
    %123 = arith.addf %119, %122 : vector<16x32xf32>
    %124 = arith.addf %3, %123 : vector<16x32xf32>
    %c0_56 = arith.constant 0 : index
    %c0_57 = arith.constant 0 : index
    %c0_58 = arith.constant 0 : index
    %125 = vector.load %arg12[%c0_56, %c0_57, %c0_58] : memref<1x1x32xf32, #tpu.memory_space<vmem>>, vector<1x1x32xf32>
    %126 = vector.shape_cast %125 : vector<1x1x32xf32> to vector<1x32xf32>
    %c0_59 = arith.constant 0 : index
    %c0_60 = arith.constant 0 : index
    %c0_61 = arith.constant 0 : index
    %127 = vector.load %arg13[%c0_59, %c0_60, %c0_61] : memref<1x1x32xf32, #tpu.memory_space<vmem>>, vector<1x1x32xf32>
    %128 = vector.shape_cast %127 : vector<1x1x32xf32> to vector<1x32xf32>
    %129 = vector.extract_strided_slice %124 {offsets = [0, 0], sizes = [16, 1], strides = [1, 1]} : vector<16x32xf32> to vector<16x1xf32>
    %130 = vector.broadcast %129 : vector<16x1xf32> to vector<16x32xf32>
    %131 = arith.subf %124, %130 : vector<16x32xf32>
    %cst_62 = arith.constant dense<0.000000e+00> : vector<16xf32>
    %132 = vector.multi_reduction <add>, %131, %cst_62 [1] : vector<16x32xf32> to vector<16xf32>
    %133 = vector.shape_cast %132 : vector<16xf32> to vector<16x1xf32>
    %cst_63 = arith.constant 3.125000e-02 : f32
    %134 = vector.broadcast %cst_63 : f32 to vector<16x1xf32>
    %135 = arith.mulf %133, %134 : vector<16x1xf32>
    %136 = arith.mulf %131, %131 : vector<16x32xf32>
    %cst_64 = arith.constant dense<0.000000e+00> : vector<16xf32>
    %137 = vector.multi_reduction <add>, %136, %cst_64 [1] : vector<16x32xf32> to vector<16xf32>
    %138 = vector.shape_cast %137 : vector<16xf32> to vector<16x1xf32>
    %cst_65 = arith.constant 3.125000e-02 : f32
    %139 = vector.broadcast %cst_65 : f32 to vector<16x1xf32>
    %140 = arith.mulf %138, %139 : vector<16x1xf32>
    %141 = arith.mulf %135, %135 : vector<16x1xf32>
    %142 = arith.subf %140, %141 : vector<16x1xf32>
    %143 = vector.broadcast %135 : vector<16x1xf32> to vector<16x32xf32>
    %144 = arith.subf %131, %143 : vector<16x32xf32>
    %cst_66 = arith.constant 9.99999974E-6 : f32
    %145 = vector.broadcast %cst_66 : f32 to vector<16x1xf32>
    %146 = arith.addf %142, %145 : vector<16x1xf32>
    %147 = math.rsqrt %146 : vector<16x1xf32>
    %148 = vector.broadcast %147 : vector<16x1xf32> to vector<16x32xf32>
    %149 = arith.mulf %144, %148 : vector<16x32xf32>
    %150 = vector.broadcast %126 : vector<1x32xf32> to vector<16x32xf32>
    %151 = arith.mulf %149, %150 : vector<16x32xf32>
    %152 = vector.broadcast %128 : vector<1x32xf32> to vector<16x32xf32>
    %153 = arith.addf %151, %152 : vector<16x32xf32>
    %c0_67 = arith.constant 0 : index
    %c0_68 = arith.constant 0 : index
    %c0_69 = arith.constant 0 : index
    %154 = vector.load %arg14[%c0_67, %c0_68, %c0_69] : memref<1x32x64xf32, #tpu.memory_space<vmem>>, vector<1x32x64xf32>
    %155 = vector.shape_cast %154 : vector<1x32x64xf32> to vector<32x64xf32>
    %cst_70 = arith.constant dense<0.000000e+00> : vector<16x64xf32>
    %156 = tpu.matmul %153, %155, %cst_70 {dimension_numbers = #tpu.dot_dimension_numbers<[1], [0], [0], [1], [0, 0, 1, 1], [], []>} : vector<16x32xf32>, vector<32x64xf32>, vector<16x64xf32> -> vector<16x64xf32>
    %c0_71 = arith.constant 0 : index
    %c0_72 = arith.constant 0 : index
    %c0_73 = arith.constant 0 : index
    %157 = vector.load %arg15[%c0_71, %c0_72, %c0_73] : memref<1x1x64xf32, #tpu.memory_space<vmem>>, vector<1x1x64xf32>
    %158 = vector.shape_cast %157 : vector<1x1x64xf32> to vector<1x64xf32>
    %159 = vector.broadcast %158 : vector<1x64xf32> to vector<16x64xf32>
    %160 = arith.addf %156, %159 : vector<16x64xf32>
    %cst_74 = arith.constant 0.000000e+00 : f32
    %161 = vector.broadcast %cst_74 : f32 to vector<16x64xf32>
    %162 = arith.maximumf %160, %161 : vector<16x64xf32>
    %c0_75 = arith.constant 0 : index
    %c0_76 = arith.constant 0 : index
    %c0_77 = arith.constant 0 : index
    %163 = vector.load %arg16[%c0_75, %c0_76, %c0_77] : memref<1x64x32xf32, #tpu.memory_space<vmem>>, vector<1x64x32xf32>
    %164 = vector.shape_cast %163 : vector<1x64x32xf32> to vector<64x32xf32>
    %cst_78 = arith.constant dense<0.000000e+00> : vector<16x32xf32>
    %165 = tpu.matmul %162, %164, %cst_78 {dimension_numbers = #tpu.dot_dimension_numbers<[1], [0], [0], [1], [0, 0, 1, 1], [], []>} : vector<16x64xf32>, vector<64x32xf32>, vector<16x32xf32> -> vector<16x32xf32>
    %c0_79 = arith.constant 0 : index
    %c0_80 = arith.constant 0 : index
    %c0_81 = arith.constant 0 : index
    %166 = vector.load %arg17[%c0_79, %c0_80, %c0_81] : memref<1x1x32xf32, #tpu.memory_space<vmem>>, vector<1x1x32xf32>
    %167 = vector.shape_cast %166 : vector<1x1x32xf32> to vector<1x32xf32>
    %168 = vector.broadcast %167 : vector<1x32xf32> to vector<16x32xf32>
    %169 = arith.addf %165, %168 : vector<16x32xf32>
    %170 = arith.addf %153, %169 : vector<16x32xf32>
    %c0_82 = arith.constant 0 : index
    %c0_83 = arith.constant 0 : index
    %c0_84 = arith.constant 0 : index
    %171 = vector.load %arg18[%c0_82, %c0_83, %c0_84] : memref<1x1x32xf32, #tpu.memory_space<vmem>>, vector<1x1x32xf32>
    %172 = vector.shape_cast %171 : vector<1x1x32xf32> to vector<1x32xf32>
    %c0_85 = arith.constant 0 : index
    %c0_86 = arith.constant 0 : index
    %c0_87 = arith.constant 0 : index
    %173 = vector.load %arg19[%c0_85, %c0_86, %c0_87] : memref<1x1x32xf32, #tpu.memory_space<vmem>>, vector<1x1x32xf32>
    %174 = vector.shape_cast %173 : vector<1x1x32xf32> to vector<1x32xf32>
    %175 = vector.extract_strided_slice %170 {offsets = [0, 0], sizes = [16, 1], strides = [1, 1]} : vector<16x32xf32> to vector<16x1xf32>
    %176 = vector.broadcast %175 : vector<16x1xf32> to vector<16x32xf32>
    %177 = arith.subf %170, %176 : vector<16x32xf32>
    %cst_88 = arith.constant dense<0.000000e+00> : vector<16xf32>
    %178 = vector.multi_reduction <add>, %177, %cst_88 [1] : vector<16x32xf32> to vector<16xf32>
    %179 = vector.shape_cast %178 : vector<16xf32> to vector<16x1xf32>
    %cst_89 = arith.constant 3.125000e-02 : f32
    %180 = vector.broadcast %cst_89 : f32 to vector<16x1xf32>
    %181 = arith.mulf %179, %180 : vector<16x1xf32>
    %182 = arith.mulf %177, %177 : vector<16x32xf32>
    %cst_90 = arith.constant dense<0.000000e+00> : vector<16xf32>
    %183 = vector.multi_reduction <add>, %182, %cst_90 [1] : vector<16x32xf32> to vector<16xf32>
    %184 = vector.shape_cast %183 : vector<16xf32> to vector<16x1xf32>
    %cst_91 = arith.constant 3.125000e-02 : f32
    %185 = vector.broadcast %cst_91 : f32 to vector<16x1xf32>
    %186 = arith.mulf %184, %185 : vector<16x1xf32>
    %187 = arith.mulf %181, %181 : vector<16x1xf32>
    %188 = arith.subf %186, %187 : vector<16x1xf32>
    %189 = vector.broadcast %181 : vector<16x1xf32> to vector<16x32xf32>
    %190 = arith.subf %177, %189 : vector<16x32xf32>
    %cst_92 = arith.constant 9.99999974E-6 : f32
    %191 = vector.broadcast %cst_92 : f32 to vector<16x1xf32>
    %192 = arith.addf %188, %191 : vector<16x1xf32>
    %193 = math.rsqrt %192 : vector<16x1xf32>
    %194 = vector.broadcast %193 : vector<16x1xf32> to vector<16x32xf32>
    %195 = arith.mulf %190, %194 : vector<16x32xf32>
    %196 = vector.broadcast %172 : vector<1x32xf32> to vector<16x32xf32>
    %197 = arith.mulf %195, %196 : vector<16x32xf32>
    %198 = vector.broadcast %174 : vector<1x32xf32> to vector<16x32xf32>
    %199 = arith.addf %197, %198 : vector<16x32xf32>
    %c0_93 = arith.constant 0 : index
    %c0_94 = arith.constant 0 : index
    %200 = vector.load %arg20[%c0_93, %c0_94] : memref<16x32xf32, #tpu.memory_space<vmem>>, vector<16x32xf32>
    tpu.vector_store %arg20[%c0_93, %c0_94], %199 {strides = array<i32>} : memref<16x32xf32, #tpu.memory_space<vmem>>, vector<16x32xf32>,
    return
  }
  func.func @transform_0(%arg0: i32, %arg1: i32) -> (i32, i32) {
    %c0_i32 = arith.constant 0 : i32
    %c0_i32_0 = arith.constant 0 : i32
    return %arg0, %c0_i32 : i32, i32
  }
  func.func @transform_1(%arg0: i32, %arg1: i32) -> (i32, i32, i32) {
    %c0_i32 = arith.constant 0 : i32
    %c0_i32_0 = arith.constant 0 : i32
    %c0_i32_1 = arith.constant 0 : i32
    return %arg0, %c0_i32, %c0_i32_0 : i32, i32, i32
  }
  func.func @transform_2(%arg0: i32, %arg1: i32) -> (i32, i32, i32) {
    %c0_i32 = arith.constant 0 : i32
    %c0_i32_0 = arith.constant 0 : i32
    %c0_i32_1 = arith.constant 0 : i32
    return %arg1, %c0_i32, %c0_i32_0 : i32, i32, i32
  }
  func.func @transform_3(%arg0: i32, %arg1: i32) -> (i32, i32, i32) {
    %c0_i32 = arith.constant 0 : i32
    %c0_i32_0 = arith.constant 0 : i32
    %c0_i32_1 = arith.constant 0 : i32
    return %arg1, %c0_i32, %c0_i32_0 : i32, i32, i32
  }
  func.func @transform_4(%arg0: i32, %arg1: i32) -> (i32, i32, i32) {
    %c0_i32 = arith.constant 0 : i32
    %c0_i32_0 = arith.constant 0 : i32
    %c0_i32_1 = arith.constant 0 : i32
    return %arg1, %c0_i32, %c0_i32_0 : i32, i32, i32
  }
  func.func @transform_5(%arg0: i32, %arg1: i32) -> (i32, i32, i32) {
    %c0_i32 = arith.constant 0 : i32
    %c0_i32_0 = arith.constant 0 : i32
    %c0_i32_1 = arith.constant 0 : i32
    return %arg1, %c0_i32, %c0_i32_0 : i32, i32, i32
  }
  func.func @transform_6(%arg0: i32, %arg1: i32) -> (i32, i32, i32) {
    %c0_i32 = arith.constant 0 : i32
    %c0_i32_0 = arith.constant 0 : i32
    %c0_i32_1 = arith.constant 0 : i32
    return %arg1, %c0_i32, %c0_i32_0 : i32, i32, i32
  }
  func.func @transform_7(%arg0: i32, %arg1: i32) -> (i32, i32, i32) {
    %c0_i32 = arith.constant 0 : i32
    %c0_i32_0 = arith.constant 0 : i32
    %c0_i32_1 = arith.constant 0 : i32
    return %arg1, %c0_i32, %c0_i32_0 : i32, i32, i32
  }
  func.func @transform_8(%arg0: i32, %arg1: i32) -> (i32, i32, i32) {
    %c0_i32 = arith.constant 0 : i32
    %c0_i32_0 = arith.constant 0 : i32
    %c0_i32_1 = arith.constant 0 : i32
    return %arg1, %c0_i32, %c0_i32_0 : i32, i32, i32
  }
  func.func @transform_9(%arg0: i32, %arg1: i32) -> (i32, i32, i32) {
    %c0_i32 = arith.constant 0 : i32
    %c0_i32_0 = arith.constant 0 : i32
    %c0_i32_1 = arith.constant 0 : i32
    return %arg1, %c0_i32, %c0_i32_0 : i32, i32, i32
  }
  func.func @transform_10(%arg0: i32, %arg1: i32) -> (i32, i32, i32) {
    %c0_i32 = arith.constant 0 : i32
    %c0_i32_0 = arith.constant 0 : i32
    %c0_i32_1 = arith.constant 0 : i32
    return %arg1, %c0_i32, %c0_i32_0 : i32, i32, i32
  }
  func.func @transform_11(%arg0: i32, %arg1: i32) -> (i32, i32, i32) {
    %c0_i32 = arith.constant 0 : i32
    %c0_i32_0 = arith.constant 0 : i32
    %c0_i32_1 = arith.constant 0 : i32
    return %arg1, %c0_i32, %c0_i32_0 : i32, i32, i32
  }
  func.func @transform_12(%arg0: i32, %arg1: i32) -> (i32, i32, i32) {
    %c0_i32 = arith.constant 0 : i32
    %c0_i32_0 = arith.constant 0 : i32
    %c0_i32_1 = arith.constant 0 : i32
    return %arg1, %c0_i32, %c0_i32_0 : i32, i32, i32
  }
  func.func @transform_13(%arg0: i32, %arg1: i32) -> (i32, i32, i32) {
    %c0_i32 = arith.constant 0 : i32
    %c0_i32_0 = arith.constant 0 : i32
    %c0_i32_1 = arith.constant 0 : i32
    return %arg1, %c0_i32, %c0_i32_0 : i32, i32, i32
  }
  func.func @transform_14(%arg0: i32, %arg1: i32) -> (i32, i32, i32) {
    %c0_i32 = arith.constant 0 : i32
    %c0_i32_0 = arith.constant 0 : i32
    %c0_i32_1 = arith.constant 0 : i32
    return %arg1, %c0_i32, %c0_i32_0 : i32, i32, i32
  }
  func.func @transform_15(%arg0: i32, %arg1: i32) -> (i32, i32, i32) {
    %c0_i32 = arith.constant 0 : i32
    %c0_i32_0 = arith.constant 0 : i32
    %c0_i32_1 = arith.constant 0 : i32
    return %arg1, %c0_i32, %c0_i32_0 : i32, i32, i32
  }
  func.func @transform_16(%arg0: i32, %arg1: i32) -> (i32, i32, i32) {
    %c0_i32 = arith.constant 0 : i32
    %c0_i32_0 = arith.constant 0 : i32
    %c0_i32_1 = arith.constant 0 : i32
    return %arg1, %c0_i32, %c0_i32_0 : i32, i32, i32
  }
  func.func @transform_17(%arg0: i32, %arg1: i32) -> (i32, i32, i32) {
    %c0_i32 = arith.constant 0 : i32
    %c0_i32_0 = arith.constant 0 : i32
    %c0_i32_1 = arith.constant 0 : i32
    return %arg1, %c0_i32, %c0_i32_0 : i32, i32, i32
  }
  func.func @transform_18(%arg0: i32, %arg1: i32) -> (i32, i32) {
    %c0_i32 = arith.constant 0 : i32
    %c0_i32_0 = arith.constant 0 : i32
    return %arg0, %c0_i32 : i32, i32
  }
}

</mosaic_0001>

<llo_original>
// kernel: tpu_custom_call.1
$region0: #{tpu_custom_call.1}
  #allocation0 [shape = 'u32[]', space=smem, size = 0x4, offset = 0x4, fixed_abs, tag = 'smem constant byte address 0x4 - core index']
  #allocation1 [shape = 'u32[72,128]{1,0:T(1,128)}', space=vmem, size = 0x9000, scoped, tag = 'internal scratch']
  #allocation2 [shape = 'f32[16,32]{1,0:T(8,128)}', space=vmem, size = 0x2000, scoped, tag = 'scratch operand']
  %s0 = inlined_call_operand.hbm [shape: f32[16,32], index: 0, kind: input, shape index: {}]
  %s1 = inlined_call_operand.hbm [shape: f32[2,1,8], index: 1, kind: input, shape index: {}]
  %s2 = inlined_call_operand.vmem [shape: f32[2,32,32], index: 2, kind: input, shape index: {}]
  %s3 = inlined_call_operand.vmem [shape: f32[2,1,32], index: 3, kind: input, shape index: {}]
  %s4 = inlined_call_operand.vmem [shape: f32[2,32,32], index: 4, kind: input, shape index: {}]
  %s5 = inlined_call_operand.hbm [shape: f32[2,1,32], index: 5, kind: input, shape index: {}]
  %s6 = inlined_call_operand.vmem [shape: f32[2,32,32], index: 6, kind: input, shape index: {}]
  %s7 = inlined_call_operand.vmem [shape: f32[2,1,32], index: 7, kind: input, shape index: {}]
  %s8 = inlined_call_operand.hbm [shape: f32[2,32,32], index: 8, kind: input, shape index: {}]
  %s9 = inlined_call_operand.vmem [shape: f32[2,1,32], index: 9, kind: input, shape index: {}]
  %s10 = inlined_call_operand.vmem [shape: f32[2,1,32], index: 10, kind: input, shape index: {}]
  %s11 = inlined_call_operand.hbm [shape: f32[2,1,32], index: 11, kind: input, shape index: {}]
  %s12 = inlined_call_operand.hbm [shape: f32[2,32,64], index: 12, kind: input, shape index: {}]
  %s13 = inlined_call_operand.vmem [shape: f32[2,1,64], index: 13, kind: input, shape index: {}]
  %s14 = inlined_call_operand.vmem [shape: f32[2,64,32], index: 14, kind: input, shape index: {}]
  %s15 = inlined_call_operand.vmem [shape: f32[2,1,32], index: 15, kind: input, shape index: {}]
  %s16 = inlined_call_operand.vmem [shape: f32[2,1,32], index: 16, kind: input, shape index: {}]
  %s17 = inlined_call_operand.hbm [shape: f32[2,1,32], index: 17, kind: input, shape index: {}]
  %s18 = inlined_call_operand.hbm [shape: f32[16,32], index: 18, kind: output, shape index: {}]
  %s19 = sld [smem:[#allocation0]]
  $region137: #{tpu_custom_call.1} parent=0
    _
  %s21 = ssub.s32 1, %s19
  %s22 = scalar_select 0, %s21, %s19
  $region1: #{tpu_custom_call.1} parent=0
    #allocation3 [shape = 'u8[8192]{0}', space=vmem, size = 0x2000, scoped, tag = 'input window, operand 0, single buffered']
    #allocation4 [shape = 's32[2]{0}', space=sflag, size = 0x8, scoped, tag = 'scoped memory for tpu_custom_call.1']
    #allocation5 [shape = 's32[2]{0}', space=sflag, size = 0x8, scoped, tag = 'scoped memory for tpu_custom_call.1']
    #allocation6 [shape = 'u8[1024]{0}', space=vmem, size = 0x400, scoped, tag = 'input window, operand 1, single buffered']
    #allocation7 [shape = 's32[1]{0}', space=sflag, size = 0x4, scoped, tag = 'scoped memory for tpu_custom_call.1']
    #allocation8 [shape = 'u8[1024]{0}', space=vmem, size = 0x400, scoped, tag = 'input window, operand 5']
    #allocation9 [shape = 'u8[32768]{0}', space=vmem, size = 0x8000, scoped, tag = 'input window, operand 8']
    #allocation10 [shape = 'u8[1024]{0}', space=vmem, size = 0x400, scoped, tag = 'input window, operand 11']
    #allocation11 [shape = 'u8[32768]{0}', space=vmem, size = 0x8000, scoped, tag = 'input window, operand 12']
    #allocation12 [shape = 'u8[1024]{0}', space=vmem, size = 0x400, scoped, tag = 'input window, operand 17']
    #allocation13 [shape = 'u8[8192]{0}', space=vmem, size = 0x2000, scoped, tag = 'output window, operand 0, single buffered']
    %23 = vsyncpa [#allocation4], 0
    %24 = vsyncpa [#allocation7], 0
    %25 = vsyncpa [#allocation5], 0
    loop: start=0, step=1, limit=4
    $region2: #{tpu_custom_call.1} parent=1 // loop_pre_header
      _
    $region3: #{tpu_custom_call.1} parent=1 // loop_header
      %s27 = sphi 0, %s31
      %p28 = scmp.ge.s32.totalorder %s27, 4
      %s34 = sphi 0, %s46
      %s35 = sphi 0, %s42
      %s36 = sphi 0, %s34
      %s37 = sphi 0, %s35
      %s38 = sphi 0, %s36
      %s39 = sphi 0, %s37
      %s49 = sphi 0, %s51
      %s52 = sphi 0, %s49
      %s53 = sphi 0, %s52
      %s69 = sphi 0, %s53
      %s75 = sphi 0, %s77
      %s78 = sphi 0, %s75
      %s79 = sphi 0, %s78
      %s95 = sphi 0, %s79
      %s101 = sphi 0, %s103
      %s104 = sphi 0, %s101
      %s105 = sphi 0, %s104
      %s121 = sphi 0, %s105
      %s127 = sphi 0, %s129
      %s130 = sphi 0, %s127
      %s131 = sphi 0, %s130
      %s147 = sphi 0, %s131
      %s153 = sphi 0, %s155
      %s156 = sphi 0, %s153
      %s157 = sphi 0, %s156
      %s173 = sphi 0, %s157
      %s179 = sphi 0, %s181
      %s182 = sphi 0, %s179
      %s183 = sphi 0, %s182
      %s199 = sphi 0, %s183
      %s205 = sphi 0, %s207
      %s208 = sphi 0, %s205
      %s209 = sphi 0, %s208
      %s225 = sphi 0, %s209
      %s231 = sphi 0, %s233
      %s234 = sphi 0, %s231
      %s235 = sphi 0, %s234
      %s251 = sphi 0, %s235
      %s257 = sphi 0, %s259
      %s260 = sphi 0, %s257
      %s261 = sphi 0, %s260
      %s277 = sphi 0, %s261
      %s283 = sphi 0, %s285
      %s286 = sphi 0, %s283
      %s287 = sphi 0, %s286
      %s303 = sphi 0, %s287
      %s309 = sphi 0, %s311
      %s312 = sphi 0, %s309
      %s313 = sphi 0, %s312
      %s329 = sphi 0, %s313
      %s335 = sphi 0, %s337
      %s338 = sphi 0, %s335
      %s339 = sphi 0, %s338
      %s355 = sphi 0, %s339
      %s361 = sphi 0, %s363
      %s364 = sphi 0, %s361
      %s365 = sphi 0, %s364
      %s381 = sphi 0, %s365
      %s387 = sphi 0, %s389
      %s390 = sphi 0, %s387
      %s391 = sphi 0, %s390
      %s407 = sphi 0, %s391
      %s413 = sphi 0, %s415
      %s416 = sphi 0, %s413
      %s417 = sphi 0, %s416
      %s433 = sphi 0, %s417
      %s439 = sphi 0, %s441
      %s442 = sphi 0, %s439
      %s443 = sphi 0, %s442
      %s459 = sphi 0, %s443
      %s465 = sphi 0, %s467
      %s468 = sphi 0, %s465
      %s469 = sphi 0, %s468
      %s485 = sphi 0, %s469
      %s491 = sphi 0, %s493
      %s494 = sphi 0, %s491
      %s495 = sphi 0, %s494
      %s511 = sphi 0, %s495
      %s517 = sphi 0, %s519
      %s520 = sphi 0, %s517
      %s521 = sphi 0, %s520
      %s537 = sphi 0, %s521
    $region4: #{tpu_custom_call.1} parent=1 // loop_header_branch
      %30 = sbr.rel (%p28) target = $region8
    $region5: #{tpu_custom_call.1} parent=1 // loop_body
      %s32 = ssub.s32 %s27, 1
      %s33 = ssub.s32 %s27, 2
      %s40 = sadd.s32 1, %s35
      %p41 = scmp.ge.s32.totalorder %s40, 2
      %s42 = scalar_select %p41, 0, %s40
      %s43 = sadd.s32 1, %s34
      %s44 = scalar_select %p41, %s43, %s34
      %p45 = scmp.ge.s32.totalorder %s44, 1
      %s46 = scalar_select %p45, 0, %s44
      %s47 = ssub.s32 %s34, %s46
      %p48 = scmp.eq.s32.totalorder %s47, 0
      %s50 = sadd.s32 %s49, 1
      %s51 = scalar_select %p48, %s49, %s50
      %p54 = pneg %p48
      %p55 = scmp.eq.s32.totalorder %s27, 1
      %p56 = por %p54, %p55
      %p57 = scmp.ne.s32.totalorder %s49, %s52
      %p58 = scmp.eq.s32.totalorder %s27, 0
      %p59 = por %p57, %p58
      %p60 = scmp.ne.s32.totalorder %s49, %s52
      %p61 = scmp.eq.s32.totalorder %s32, 1
      %p62 = por %p60, %p61
      %p63 = scmp.ne.s32.totalorder %s52, %s53
      %p64 = scmp.eq.s32.totalorder %s32, 0
      %p65 = por %p63, %p64
      %p66 = scmp.ne.s32.totalorder %s52, %s53
      %p67 = scmp.eq.s32.totalorder %s33, 1
      %p68 = por %p66, %p67
      %p70 = scmp.ne.s32.totalorder %s53, %s69
      %p71 = scmp.eq.s32.totalorder %s33, 0
      %p72 = por %p70, %p71
      %s73 = ssub.s32 %s34, %s46
      %p74 = scmp.eq.s32.totalorder %s73, 0
      %s76 = sadd.s32 %s75, 1
      %s77 = scalar_select %p74, %s75, %s76
      %p80 = pneg %p74
      %p81 = scmp.eq.s32.totalorder %s27, 1
      %p82 = por %p80, %p81
      %p83 = scmp.ne.s32.totalorder %s75, %s78
      %p84 = scmp.eq.s32.totalorder %s27, 0
      %p85 = por %p83, %p84
      %p86 = scmp.ne.s32.totalorder %s75, %s78
      %p87 = scmp.eq.s32.totalorder %s32, 1
      %p88 = por %p86, %p87
      %p89 = scmp.ne.s32.totalorder %s78, %s79
      %p90 = scmp.eq.s32.totalorder %s32, 0
      %p91 = por %p89, %p90
      %p92 = scmp.ne.s32.totalorder %s78, %s79
      %p93 = scmp.eq.s32.totalorder %s33, 1
      %p94 = por %p92, %p93
      %p96 = scmp.ne.s32.totalorder %s79, %s95
      %p97 = scmp.eq.s32.totalorder %s33, 0
      %p98 = por %p96, %p97
      %s99 = ssub.s32 %s35, %s42
      %p100 = scmp.eq.s32.totalorder %s99, 0
      %s102 = sadd.s32 %s101, 1
      %s103 = scalar_select %p100, %s101, %s102
      %p106 = pneg %p100
      %p107 = scmp.eq.s32.totalorder %s27, 1
      %p108 = por %p106, %p107
      %p109 = scmp.ne.s32.totalorder %s101, %s104
      %p110 = scmp.eq.s32.totalorder %s27, 0
      %p111 = por %p109, %p110
      %p112 = scmp.ne.s32.totalorder %s101, %s104
      %p113 = scmp.eq.s32.totalorder %s32, 1
      %p114 = por %p112, %p113
      %p115 = scmp.ne.s32.totalorder %s104, %s105
      %p116 = scmp.eq.s32.totalorder %s32, 0
      %p117 = por %p115, %p116
      %p118 = scmp.ne.s32.totalorder %s104, %s105
      %p119 = scmp.eq.s32.totalorder %s33, 1
      %p120 = por %p118, %p119
      %p122 = scmp.ne.s32.totalorder %s105, %s121
      %p123 = scmp.eq.s32.totalorder %s33, 0
      %p124 = por %p122, %p123
      %s125 = ssub.s32 %s35, %s42
      %p126 = scmp.eq.s32.totalorder %s125, 0
      %s128 = sadd.s32 %s127, 1
      %s129 = scalar_select %p126, %s127, %s128
      %p132 = pneg %p126
      %p133 = scmp.eq.s32.totalorder %s27, 1
      %p134 = por %p132, %p133
      %p135 = scmp.ne.s32.totalorder %s127, %s130
      %p136 = scmp.eq.s32.totalorder %s27, 0
      %p137 = por %p135, %p136
      %p138 = scmp.ne.s32.totalorder %s127, %s130
      %p139 = scmp.eq.s32.totalorder %s32, 1
      %p140 = por %p138, %p139
      %p141 = scmp.ne.s32.totalorder %s130, %s131
      %p142 = scmp.eq.s32.totalorder %s32, 0
      %p143 = por %p141, %p142
      %p144 = scmp.ne.s32.totalorder %s130, %s131
      %p145 = scmp.eq.s32.totalorder %s33, 1
      %p146 = por %p144, %p145
      %p148 = scmp.ne.s32.totalorder %s131, %s147
      %p149 = scmp.eq.s32.totalorder %s33, 0
      %p150 = por %p148, %p149
      %s151 = ssub.s32 %s35, %s42
      %p152 = scmp.eq.s32.totalorder %s151, 0
      %s154 = sadd.s32 %s153, 1
      %s155 = scalar_select %p152, %s153, %s154
      %p158 = pneg %p152
      %p159 = scmp.eq.s32.totalorder %s27, 1
      %p160 = por %p158, %p159
      %p161 = scmp.ne.s32.totalorder %s153, %s156
      %p162 = scmp.eq.s32.totalorder %s27, 0
      %p163 = por %p161, %p162
      %p164 = scmp.ne.s32.totalorder %s153, %s156
      %p165 = scmp.eq.s32.totalorder %s32, 1
      %p166 = por %p164, %p165
      %p167 = scmp.ne.s32.totalorder %s156, %s157
      %p168 = scmp.eq.s32.totalorder %s32, 0
      %p169 = por %p167, %p168
      %p170 = scmp.ne.s32.totalorder %s156, %s157
      %p171 = scmp.eq.s32.totalorder %s33, 1
      %p172 = por %p170, %p171
      %p174 = scmp.ne.s32.totalorder %s157, %s173
      %p175 = scmp.eq.s32.totalorder %s33, 0
      %p176 = por %p174, %p175
      %s177 = ssub.s32 %s35, %s42
      %p178 = scmp.eq.s32.totalorder %s177, 0
      %s180 = sadd.s32 %s179, 1
      %s181 = scalar_select %p178, %s179, %s180
      %p184 = pneg %p178
      %p185 = scmp.eq.s32.totalorder %s27, 1
      %p186 = por %p184, %p185
      %p187 = scmp.ne.s32.totalorder %s179, %s182
      %p188 = scmp.eq.s32.totalorder %s27, 0
      %p189 = por %p187, %p188
      %p190 = scmp.ne.s32.totalorder %s179, %s182
      %p191 = scmp.eq.s32.totalorder %s32, 1
      %p192 = por %p190, %p191
      %p193 = scmp.ne.s32.totalorder %s182, %s183
      %p194 = scmp.eq.s32.totalorder %s32, 0
      %p195 = por %p193, %p194
      %p196 = scmp.ne.s32.totalorder %s182, %s183
      %p197 = scmp.eq.s32.totalorder %s33, 1
      %p198 = por %p196, %p197
      %p200 = scmp.ne.s32.totalorder %s183, %s199
      %p201 = scmp.eq.s32.totalorder %s33, 0
      %p202 = por %p200, %p201
      %s203 = ssub.s32 %s35, %s42
      %p204 = scmp.eq.s32.totalorder %s203, 0
      %s206 = sadd.s32 %s205, 1
      %s207 = scalar_select %p204, %s205, %s206
      %p210 = pneg %p204
      %p211 = scmp.eq.s32.totalorder %s27, 1
      %p212 = por %p210, %p211
      %p213 = scmp.ne.s32.totalorder %s205, %s208
      %p214 = scmp.eq.s32.totalorder %s27, 0
      %p215 = por %p213, %p214
      %p216 = scmp.ne.s32.totalorder %s205, %s208
      %p217 = scmp.eq.s32.totalorder %s32, 1
      %p218 = por %p216, %p217
      %p219 = scmp.ne.s32.totalorder %s208, %s209
      %p220 = scmp.eq.s32.totalorder %s32, 0
      %p221 = por %p219, %p220
      %p222 = scmp.ne.s32.totalorder %s208, %s209
      %p223 = scmp.eq.s32.totalorder %s33, 1
      %p224 = por %p222, %p223
      %p226 = scmp.ne.s32.totalorder %s209, %s225
      %p227 = scmp.eq.s32.totalorder %s33, 0
      %p228 = por %p226, %p227
      %s229 = ssub.s32 %s35, %s42
      %p230 = scmp.eq.s32.totalorder %s229, 0
      %s232 = sadd.s32 %s231, 1
      %s233 = scalar_select %p230, %s231, %s232
      %p236 = pneg %p230
      %p237 = scmp.eq.s32.totalorder %s27, 1
      %p238 = por %p236, %p237
      %p239 = scmp.ne.s32.totalorder %s231, %s234
      %p240 = scmp.eq.s32.totalorder %s27, 0
      %p241 = por %p239, %p240
      %p242 = scmp.ne.s32.totalorder %s231, %s234
      %p243 = scmp.eq.s32.totalorder %s32, 1
      %p244 = por %p242, %p243
      %p245 = scmp.ne.s32.totalorder %s234, %s235
      %p246 = scmp.eq.s32.totalorder %s32, 0
      %p247 = por %p245, %p246
      %p248 = scmp.ne.s32.totalorder %s234, %s235
      %p249 = scmp.eq.s32.totalorder %s33, 1
      %p250 = por %p248, %p249
      %p252 = scmp.ne.s32.totalorder %s235, %s251
      %p253 = scmp.eq.s32.totalorder %s33, 0
      %p254 = por %p252, %p253
      %s255 = ssub.s32 %s35, %s42
      %p256 = scmp.eq.s32.totalorder %s255, 0
      %s258 = sadd.s32 %s257, 1
      %s259 = scalar_select %p256, %s257, %s258
      %p262 = pneg %p256
      %p263 = scmp.eq.s32.totalorder %s27, 1
      %p264 = por %p262, %p263
      %p265 = scmp.ne.s32.totalorder %s257, %s260
      %p266 = scmp.eq.s32.totalorder %s27, 0
      %p267 = por %p265, %p266
      %p268 = scmp.ne.s32.totalorder %s257, %s260
      %p269 = scmp.eq.s32.totalorder %s32, 1
      %p270 = por %p268, %p269
      %p271 = scmp.ne.s32.totalorder %s260, %s261
      %p272 = scmp.eq.s32.totalorder %s32, 0
      %p273 = por %p271, %p272
      %p274 = scmp.ne.s32.totalorder %s260, %s261
      %p275 = scmp.eq.s32.totalorder %s33, 1
      %p276 = por %p274, %p275
      %p278 = scmp.ne.s32.totalorder %s261, %s277
      %p279 = scmp.eq.s32.totalorder %s33, 0
      %p280 = por %p278, %p279
      %s281 = ssub.s32 %s35, %s42
      %p282 = scmp.eq.s32.totalorder %s281, 0
      %s284 = sadd.s32 %s283, 1
      %s285 = scalar_select %p282, %s283, %s284
      %p288 = pneg %p282
      %p289 = scmp.eq.s32.totalorder %s27, 1
      %p290 = por %p288, %p289
      %p291 = scmp.ne.s32.totalorder %s283, %s286
      %p292 = scmp.eq.s32.totalorder %s27, 0
      %p293 = por %p291, %p292
      %p294 = scmp.ne.s32.totalorder %s283, %s286
      %p295 = scmp.eq.s32.totalorder %s32, 1
      %p296 = por %p294, %p295
      %p297 = scmp.ne.s32.totalorder %s286, %s287
      %p298 = scmp.eq.s32.totalorder %s32, 0
      %p299 = por %p297, %p298
      %p300 = scmp.ne.s32.totalorder %s286, %s287
      %p301 = scmp.eq.s32.totalorder %s33, 1
      %p302 = por %p300, %p301
      %p304 = scmp.ne.s32.totalorder %s287, %s303
      %p305 = scmp.eq.s32.totalorder %s33, 0
      %p306 = por %p304, %p305
      %s307 = ssub.s32 %s35, %s42
      %p308 = scmp.eq.s32.totalorder %s307, 0
      %s310 = sadd.s32 %s309, 1
      %s311 = scalar_select %p308, %s309, %s310
      %p314 = pneg %p308
      %p315 = scmp.eq.s32.totalorder %s27, 1
      %p316 = por %p314, %p315
      %p317 = scmp.ne.s32.totalorder %s309, %s312
      %p318 = scmp.eq.s32.totalorder %s27, 0
      %p319 = por %p317, %p318
      %p320 = scmp.ne.s32.totalorder %s309, %s312
      %p321 = scmp.eq.s32.totalorder %s32, 1
      %p322 = por %p320, %p321
      %p323 = scmp.ne.s32.totalorder %s312, %s313
      %p324 = scmp.eq.s32.totalorder %s32, 0
      %p325 = por %p323, %p324
      %p326 = scmp.ne.s32.totalorder %s312, %s313
      %p327 = scmp.eq.s32.totalorder %s33, 1
      %p328 = por %p326, %p327
      %p330 = scmp.ne.s32.totalorder %s313, %s329
      %p331 = scmp.eq.s32.totalorder %s33, 0
      %p332 = por %p330, %p331
      %s333 = ssub.s32 %s35, %s42
      %p334 = scmp.eq.s32.totalorder %s333, 0
      %s336 = sadd.s32 %s335, 1
      %s337 = scalar_select %p334, %s335, %s336
      %p340 = pneg %p334
      %p341 = scmp.eq.s32.totalorder %s27, 1
      %p342 = por %p340, %p341
      %p343 = scmp.ne.s32.totalorder %s335, %s338
      %p344 = scmp.eq.s32.totalorder %s27, 0
      %p345 = por %p343, %p344
      %p346 = scmp.ne.s32.totalorder %s335, %s338
      %p347 = scmp.eq.s32.totalorder %s32, 1
      %p348 = por %p346, %p347
      %p349 = scmp.ne.s32.totalorder %s338, %s339
      %p350 = scmp.eq.s32.totalorder %s32, 0
      %p351 = por %p349, %p350
      %p352 = scmp.ne.s32.totalorder %s338, %s339
      %p353 = scmp.eq.s32.totalorder %s33, 1
      %p354 = por %p352, %p353
      %p356 = scmp.ne.s32.totalorder %s339, %s355
      %p357 = scmp.eq.s32.totalorder %s33, 0
      %p358 = por %p356, %p357
      %s359 = ssub.s32 %s35, %s42
      %p360 = scmp.eq.s32.totalorder %s359, 0
      %s362 = sadd.s32 %s361, 1
      %s363 = scalar_select %p360, %s361, %s362
      %p366 = pneg %p360
      %p367 = scmp.eq.s32.totalorder %s27, 1
      %p368 = por %p366, %p367
      %p369 = scmp.ne.s32.totalorder %s361, %s364
      %p370 = scmp.eq.s32.totalorder %s27, 0
      %p371 = por %p369, %p370
      %p372 = scmp.ne.s32.totalorder %s361, %s364
      %p373 = scmp.eq.s32.totalorder %s32, 1
      %p374 = por %p372, %p373
      %p375 = scmp.ne.s32.totalorder %s364, %s365
      %p376 = scmp.eq.s32.totalorder %s32, 0
      %p377 = por %p375, %p376
      %p378 = scmp.ne.s32.totalorder %s364, %s365
      %p379 = scmp.eq.s32.totalorder %s33, 1
      %p380 = por %p378, %p379
      %p382 = scmp.ne.s32.totalorder %s365, %s381
      %p383 = scmp.eq.s32.totalorder %s33, 0
      %p384 = por %p382, %p383
      %s385 = ssub.s32 %s35, %s42
      %p386 = scmp.eq.s32.totalorder %s385, 0
      %s388 = sadd.s32 %s387, 1
      %s389 = scalar_select %p386, %s387, %s388
      %p392 = pneg %p386
      %p393 = scmp.eq.s32.totalorder %s27, 1
      %p394 = por %p392, %p393
      %p395 = scmp.ne.s32.totalorder %s387, %s390
      %p396 = scmp.eq.s32.totalorder %s27, 0
      %p397 = por %p395, %p396
      %p398 = scmp.ne.s32.totalorder %s387, %s390
      %p399 = scmp.eq.s32.totalorder %s32, 1
      %p400 = por %p398, %p399
      %p401 = scmp.ne.s32.totalorder %s390, %s391
      %p402 = scmp.eq.s32.totalorder %s32, 0
      %p403 = por %p401, %p402
      %p404 = scmp.ne.s32.totalorder %s390, %s391
      %p405 = scmp.eq.s32.totalorder %s33, 1
      %p406 = por %p404, %p405
      %p408 = scmp.ne.s32.totalorder %s391, %s407
      %p409 = scmp.eq.s32.totalorder %s33, 0
      %p410 = por %p408, %p409
      %s411 = ssub.s32 %s35, %s42
      %p412 = scmp.eq.s32.totalorder %s411, 0
      %s414 = sadd.s32 %s413, 1
      %s415 = scalar_select %p412, %s413, %s414
      %p418 = pneg %p412
      %p419 = scmp.eq.s32.totalorder %s27, 1
      %p420 = por %p418, %p419
      %p421 = scmp.ne.s32.totalorder %s413, %s416
      %p422 = scmp.eq.s32.totalorder %s27, 0
      %p423 = por %p421, %p422
      %p424 = scmp.ne.s32.totalorder %s413, %s416
      %p425 = scmp.eq.s32.totalorder %s32, 1
      %p426 = por %p424, %p425
      %p427 = scmp.ne.s32.totalorder %s416, %s417
      %p428 = scmp.eq.s32.totalorder %s32, 0
      %p429 = por %p427, %p428
      %p430 = scmp.ne.s32.totalorder %s416, %s417
      %p431 = scmp.eq.s32.totalorder %s33, 1
      %p432 = por %p430, %p431
      %p434 = scmp.ne.s32.totalorder %s417, %s433
      %p435 = scmp.eq.s32.totalorder %s33, 0
      %p436 = por %p434, %p435
      %s437 = ssub.s32 %s35, %s42
      %p438 = scmp.eq.s32.totalorder %s437, 0
      %s440 = sadd.s32 %s439, 1
      %s441 = scalar_select %p438, %s439, %s440
      %p444 = pneg %p438
      %p445 = scmp.eq.s32.totalorder %s27, 1
      %p446 = por %p444, %p445
      %p447 = scmp.ne.s32.totalorder %s439, %s442
      %p448 = scmp.eq.s32.totalorder %s27, 0
      %p449 = por %p447, %p448
      %p450 = scmp.ne.s32.totalorder %s439, %s442
      %p451 = scmp.eq.s32.totalorder %s32, 1
      %p452 = por %p450, %p451
      %p453 = scmp.ne.s32.totalorder %s442, %s443
      %p454 = scmp.eq.s32.totalorder %s32, 0
      %p455 = por %p453, %p454
      %p456 = scmp.ne.s32.totalorder %s442, %s443
      %p457 = scmp.eq.s32.totalorder %s33, 1
      %p458 = por %p456, %p457
      %p460 = scmp.ne.s32.totalorder %s443, %s459
      %p461 = scmp.eq.s32.totalorder %s33, 0
      %p462 = por %p460, %p461
      %s463 = ssub.s32 %s35, %s42
      %p464 = scmp.eq.s32.totalorder %s463, 0
      %s466 = sadd.s32 %s465, 1
      %s467 = scalar_select %p464, %s465, %s466
      %p470 = pneg %p464
      %p471 = scmp.eq.s32.totalorder %s27, 1
      %p472 = por %p470, %p471
      %p473 = scmp.ne.s32.totalorder %s465, %s468
      %p474 = scmp.eq.s32.totalorder %s27, 0
      %p475 = por %p473, %p474
      %p476 = scmp.ne.s32.totalorder %s465, %s468
      %p477 = scmp.eq.s32.totalorder %s32, 1
      %p478 = por %p476, %p477
      %p479 = scmp.ne.s32.totalorder %s468, %s469
      %p480 = scmp.eq.s32.totalorder %s32, 0
      %p481 = por %p479, %p480
      %p482 = scmp.ne.s32.totalorder %s468, %s469
      %p483 = scmp.eq.s32.totalorder %s33, 1
      %p484 = por %p482, %p483
      %p486 = scmp.ne.s32.totalorder %s469, %s485
      %p487 = scmp.eq.s32.totalorder %s33, 0
      %p488 = por %p486, %p487
      %s489 = ssub.s32 %s35, %s42
      %p490 = scmp.eq.s32.totalorder %s489, 0
      %s492 = sadd.s32 %s491, 1
      %s493 = scalar_select %p490, %s491, %s492
      %p496 = pneg %p490
      %p497 = scmp.eq.s32.totalorder %s27, 1
      %p498 = por %p496, %p497
      %p499 = scmp.ne.s32.totalorder %s491, %s494
      %p500 = scmp.eq.s32.totalorder %s27, 0
      %p501 = por %p499, %p500
      %p502 = scmp.ne.s32.totalorder %s491, %s494
      %p503 = scmp.eq.s32.totalorder %s32, 1
      %p504 = por %p502, %p503
      %p505 = scmp.ne.s32.totalorder %s494, %s495
      %p506 = scmp.eq.s32.totalorder %s32, 0
      %p507 = por %p505, %p506
      %p508 = scmp.ne.s32.totalorder %s494, %s495
      %p509 = scmp.eq.s32.totalorder %s33, 1
      %p510 = por %p508, %p509
      %p512 = scmp.ne.s32.totalorder %s495, %s511
      %p513 = scmp.eq.s32.totalorder %s33, 0
      %p514 = por %p512, %p513
      %s515 = ssub.s32 %s34, %s46
      %p516 = scmp.eq.s32.totalorder %s515, 0
      %s518 = sadd.s32 %s517, 1
      %s519 = scalar_select %p516, %s517, %s518
      %p522 = pneg %p516
      %p523 = scmp.eq.s32.totalorder %s27, 1
      %p524 = por %p522, %p523
      %p525 = scmp.ne.s32.totalorder %s517, %s520
      %p526 = scmp.eq.s32.totalorder %s27, 0
      %p527 = por %p525, %p526
      %p528 = scmp.ne.s32.totalorder %s517, %s520
      %p529 = scmp.eq.s32.totalorder %s32, 1
      %p530 = por %p528, %p529
      %p531 = scmp.ne.s32.totalorder %s520, %s521
      %p532 = scmp.eq.s32.totalorder %s32, 0
      %p533 = por %p531, %p532
      %p534 = scmp.ne.s32.totalorder %s520, %s521
      %p535 = scmp.eq.s32.totalorder %s33, 1
      %p536 = por %p534, %p535
      %p538 = scmp.ne.s32.totalorder %s521, %s537
      %p539 = scmp.eq.s32.totalorder %s33, 0
      %p540 = por %p538, %p539
      %p541 = scmp.le.s32.totalorder 1, %s27
      %p542 = scmp.lt.s32.totalorder %s27, 3
      %p543 = pnand %p541, %p542
      %p544 = pneg %p543
      // Predicated region
      $region9: #{tpu_custom_call.1} parent=5 // pred_check
        _
      $region10: #{tpu_custom_call.1} parent=5 // pred_check_branch
        %546 = sbr.rel (%p543) target = $region12
      $region11: #{tpu_custom_call.1} parent=5 // pred_region
        %s547 = ssub.s32 %s27, 1
        // Predicated region
        $region13: #{tpu_custom_call.1} parent=11 // pred_check
          %p548 = pneg %p65
        $region14: #{tpu_custom_call.1} parent=11 // pred_check_branch
          %550 = sbr.rel (%p548) target = $region16
        $region15: #{tpu_custom_call.1} parent=11 // pred_region
          %s551 = smul.u32 2, %s36
          %553 = vsyncadd [#allocation4], 0
          %s554 = smul.addr %s551, 8
          %s555 = scalar_lea.hbm %s0, %s554
          %s556 = sshll.u32 %s555, 4
          %s557 = int_to_ptr.hbm [resolvable:$true] %s556
          %s558 = sshll.u32 [#allocation3], 4
          %s559 = int_to_ptr.vmem [resolvable:$true] %s558
          %564 = dma.hbm_to_vmem [thread:$0]  %s557, 256, %s559, [#allocation4], 128, 128, 8
        $region16: #{tpu_custom_call.1} parent=11 // pred_fallthru
          _
        // Predicated region
        $region17: #{tpu_custom_call.1} parent=11 // pred_check
          %p565 = pneg %p91
        $region18: #{tpu_custom_call.1} parent=11 // pred_check_branch
          %567 = sbr.rel (%p565) target = $region20
        $region19: #{tpu_custom_call.1} parent=11 // pred_region
          %s568 = smul.u32 2, %s36
          %570 = vsyncadd [#allocation7], 0
          %s571 = scalar_lea.hbm %s1, %s568
          %s572 = sshll.u32 %s571, 4
          %s573 = int_to_ptr.hbm [resolvable:$true] %s572
          %s574 = sshll.u32 [#allocation6], 4
          %s575 = int_to_ptr.vmem [resolvable:$true] %s574
          %580 = dma.hbm_to_vmem [thread:$0]  %s573, 32, %s575, [#allocation7], 16, 16, 1
        $region20: #{tpu_custom_call.1} parent=11 // pred_fallthru
          _
      $region12: #{tpu_custom_call.1} parent=5 // pred_fallthru
        _
      %p581 = scmp.lt.s32.totalorder %s27, 2
      // Predicated region
      $region21: #{tpu_custom_call.1} parent=5 // pred_check
        %p582 = pneg %p581
      $region22: #{tpu_custom_call.1} parent=5 // pred_check_branch
        %584 = sbr.rel (%p582) target = $region24
      $region23: #{tpu_custom_call.1} parent=5 // pred_region
        // Predicated region
        $region25: #{tpu_custom_call.1} parent=23 // pred_check
          %p585 = pneg %p111
        $region26: #{tpu_custom_call.1} parent=23 // pred_check_branch
          %587 = sbr.rel (%p585) target = $region28
        $region27: #{tpu_custom_call.1} parent=23 // pred_region
          %p588 = scmp.lt.s32.totalorder %s35, 1
          %s589 = scalar_select %p588, %s35, 1
          %s590 = smul.addr %s589, 4
          %s591 = smul.addr %s590, 8
          %s592 = scalar_lea.vmem %s2, %s591
        $region28: #{tpu_custom_call.1} parent=23 // pred_fallthru
          _
        // Predicated region
        $region29: #{tpu_custom_call.1} parent=23 // pred_check
          %p593 = pneg %p137
        $region30: #{tpu_custom_call.1} parent=23 // pred_check_branch
          %595 = sbr.rel (%p593) target = $region32
        $region31: #{tpu_custom_call.1} parent=23 // pred_region
          %p596 = scmp.lt.s32.totalorder %s35, 1
          %s597 = scalar_select %p596, %s35, 1
          %s598 = scalar_lea.vmem %s3, %s597
        $region32: #{tpu_custom_call.1} parent=23 // pred_fallthru
          _
        // Predicated region
        $region33: #{tpu_custom_call.1} parent=23 // pred_check
          %p599 = pneg %p163
        $region34: #{tpu_custom_call.1} parent=23 // pred_check_branch
          %601 = sbr.rel (%p599) target = $region36
        $region35: #{tpu_custom_call.1} parent=23 // pred_region
          %p602 = scmp.lt.s32.totalorder %s35, 1
          %s603 = scalar_select %p602, %s35, 1
          %s604 = smul.addr %s603, 4
          %s605 = smul.addr %s604, 8
          %s606 = scalar_lea.vmem %s4, %s605
        $region36: #{tpu_custom_call.1} parent=23 // pred_fallthru
          _
        // Predicated region
        $region37: #{tpu_custom_call.1} parent=23 // pred_check
          %p607 = pneg %p189
        $region38: #{tpu_custom_call.1} parent=23 // pred_check_branch
          %609 = sbr.rel (%p607) target = $region40
        $region39: #{tpu_custom_call.1} parent=23 // pred_region
          %s610 = sand.u32 %s27, 1
          %s611 = scalar_lea.sflag [#allocation4], %s610
          %s612 = sand.u32 %s179, 1
          %s613 = scalar_lea.vmem [#allocation8], %s612
          %615 = vsyncadd %s611, 0
          %s616 = scalar_lea.hbm %s5, %s35
          %s618 = sshll.u32 %s616, 4
          %s619 = int_to_ptr.hbm [resolvable:$true] %s618
          %s620 = sshll.u32 %s613, 4
          %s621 = int_to_ptr.vmem [resolvable:$true] %s620
          %623 = dma.hbm_to_vmem [thread:$0]  %s619, 16, %s621, %s611
        $region40: #{tpu_custom_call.1} parent=23 // pred_fallthru
          _
        // Predicated region
        $region41: #{tpu_custom_call.1} parent=23 // pred_check
          %p624 = pneg %p215
        $region42: #{tpu_custom_call.1} parent=23 // pred_check_branch
          %626 = sbr.rel (%p624) target = $region44
        $region43: #{tpu_custom_call.1} parent=23 // pred_region
          %p627 = scmp.lt.s32.totalorder %s35, 1
          %s628 = scalar_select %p627, %s35, 1
          %s629 = smul.addr %s628, 4
          %s630 = smul.addr %s629, 8
          %s631 = scalar_lea.vmem %s6, %s630
        $region44: #{tpu_custom_call.1} parent=23 // pred_fallthru
          _
        // Predicated region
        $region45: #{tpu_custom_call.1} parent=23 // pred_check
          %p632 = pneg %p241
        $region46: #{tpu_custom_call.1} parent=23 // pred_check_branch
          %634 = sbr.rel (%p632) target = $region48
        $region47: #{tpu_custom_call.1} parent=23 // pred_region
          %p635 = scmp.lt.s32.totalorder %s35, 1
          %s636 = scalar_select %p635, %s35, 1
          %s637 = scalar_lea.vmem %s7, %s636
        $region48: #{tpu_custom_call.1} parent=23 // pred_fallthru
          _
        // Predicated region
        $region49: #{tpu_custom_call.1} parent=23 // pred_check
          %p638 = pneg %p267
        $region50: #{tpu_custom_call.1} parent=23 // pred_check_branch
          %640 = sbr.rel (%p638) target = $region52
        $region51: #{tpu_custom_call.1} parent=23 // pred_region
          %s641 = sand.u32 %s27, 1
          %s642 = scalar_lea.sflag [#allocation4], %s641
          %s643 = sand.u32 %s257, 1
          %s644 = smul.addr %s643, 32
          %s645 = scalar_lea.vmem [#allocation9], %s644
          %647 = vsyncadd %s642, 0
          %s648 = smul.addr %s35, 4
          %s649 = smul.addr %s648, 8
          %s650 = scalar_lea.hbm %s8, %s649
          %s651 = sshll.u32 %s650, 4
          %s652 = int_to_ptr.hbm [resolvable:$true] %s651
          %s653 = sshll.u32 %s645, 4
          %s654 = int_to_ptr.vmem [resolvable:$true] %s653
          %659 = dma.hbm_to_vmem [thread:$0]  %s652, 512, %s654, %s642, 128, 128, 8
        $region52: #{tpu_custom_call.1} parent=23 // pred_fallthru
          _
        // Predicated region
        $region53: #{tpu_custom_call.1} parent=23 // pred_check
          %p660 = pneg %p293
        $region54: #{tpu_custom_call.1} parent=23 // pred_check_branch
          %662 = sbr.rel (%p660) target = $region56
        $region55: #{tpu_custom_call.1} parent=23 // pred_region
          %p663 = scmp.lt.s32.totalorder %s35, 1
          %s664 = scalar_select %p663, %s35, 1
          %s665 = scalar_lea.vmem %s9, %s664
        $region56: #{tpu_custom_call.1} parent=23 // pred_fallthru
          _
        // Predicated region
        $region57: #{tpu_custom_call.1} parent=23 // pred_check
          %p666 = pneg %p319
        $region58: #{tpu_custom_call.1} parent=23 // pred_check_branch
          %668 = sbr.rel (%p666) target = $region60
        $region59: #{tpu_custom_call.1} parent=23 // pred_region
          %p669 = scmp.lt.s32.totalorder %s35, 1
          %s670 = scalar_select %p669, %s35, 1
          %s671 = scalar_lea.vmem %s10, %s670
        $region60: #{tpu_custom_call.1} parent=23 // pred_fallthru
          _
        // Predicated region
        $region61: #{tpu_custom_call.1} parent=23 // pred_check
          %p672 = pneg %p345
        $region62: #{tpu_custom_call.1} parent=23 // pred_check_branch
          %674 = sbr.rel (%p672) target = $region64
        $region63: #{tpu_custom_call.1} parent=23 // pred_region
          %s675 = sand.u32 %s27, 1
          %s676 = scalar_lea.sflag [#allocation4], %s675
          %s677 = sand.u32 %s335, 1
          %s678 = scalar_lea.vmem [#allocation10], %s677
          %680 = vsyncadd %s676, 0
          %s681 = scalar_lea.hbm %s11, %s35
          %s683 = sshll.u32 %s681, 4
          %s684 = int_to_ptr.hbm [resolvable:$true] %s683
          %s685 = sshll.u32 %s678, 4
          %s686 = int_to_ptr.vmem [resolvable:$true] %s685
          %688 = dma.hbm_to_vmem [thread:$0]  %s684, 16, %s686, %s676
        $region64: #{tpu_custom_call.1} parent=23 // pred_fallthru
          _
        // Predicated region
        $region65: #{tpu_custom_call.1} parent=23 // pred_check
          %p689 = pneg %p371
        $region66: #{tpu_custom_call.1} parent=23 // pred_check_branch
          %691 = sbr.rel (%p689) target = $region68
        $region67: #{tpu_custom_call.1} parent=23 // pred_region
          %s692 = sand.u32 %s27, 1
          %s693 = scalar_lea.sflag [#allocation4], %s692
          %s694 = sand.u32 %s361, 1
          %s695 = smul.addr %s694, 32
          %s696 = scalar_lea.vmem [#allocation11], %s695
          %698 = vsyncadd %s693, 0
          %s699 = smul.addr %s35, 4
          %s700 = smul.addr %s699, 8
          %s701 = scalar_lea.hbm %s12, %s700
          %s702 = sshll.u32 %s701, 4
          %s703 = int_to_ptr.hbm [resolvable:$true] %s702
          %s704 = sshll.u32 %s696, 4
          %s705 = int_to_ptr.vmem [resolvable:$true] %s704
          %710 = dma.hbm_to_vmem [thread:$0]  %s703, 512, %s705, %s693, 128, 128, 8
        $region68: #{tpu_custom_call.1} parent=23 // pred_fallthru
          _
        // Predicated region
        $region69: #{tpu_custom_call.1} parent=23 // pred_check
          %p711 = pneg %p397
        $region70: #{tpu_custom_call.1} parent=23 // pred_check_branch
          %713 = sbr.rel (%p711) target = $region72
        $region71: #{tpu_custom_call.1} parent=23 // pred_region
          %p714 = scmp.lt.s32.totalorder %s35, 1
          %s715 = scalar_select %p714, %s35, 1
          %s716 = scalar_lea.vmem %s13, %s715
        $region72: #{tpu_custom_call.1} parent=23 // pred_fallthru
          _
        // Predicated region
        $region73: #{tpu_custom_call.1} parent=23 // pred_check
          %p717 = pneg %p423
        $region74: #{tpu_custom_call.1} parent=23 // pred_check_branch
          %719 = sbr.rel (%p717) target = $region76
        $region75: #{tpu_custom_call.1} parent=23 // pred_region
          %p720 = scmp.lt.s32.totalorder %s35, 1
          %s721 = scalar_select %p720, %s35, 1
          %s722 = smul.addr %s721, 8
          %s723 = smul.addr %s722, 8
          %s724 = scalar_lea.vmem %s14, %s723
        $region76: #{tpu_custom_call.1} parent=23 // pred_fallthru
          _
        // Predicated region
        $region77: #{tpu_custom_call.1} parent=23 // pred_check
          %p725 = pneg %p449
        $region78: #{tpu_custom_call.1} parent=23 // pred_check_branch
          %727 = sbr.rel (%p725) target = $region80
        $region79: #{tpu_custom_call.1} parent=23 // pred_region
          %p728 = scmp.lt.s32.totalorder %s35, 1
          %s729 = scalar_select %p728, %s35, 1
          %s730 = scalar_lea.vmem %s15, %s729
        $region80: #{tpu_custom_call.1} parent=23 // pred_fallthru
          _
        // Predicated region
        $region81: #{tpu_custom_call.1} parent=23 // pred_check
          %p731 = pneg %p475
        $region82: #{tpu_custom_call.1} parent=23 // pred_check_branch
          %733 = sbr.rel (%p731) target = $region84
        $region83: #{tpu_custom_call.1} parent=23 // pred_region
          %p734 = scmp.lt.s32.totalorder %s35, 1
          %s735 = scalar_select %p734, %s35, 1
          %s736 = scalar_lea.vmem %s16, %s735
        $region84: #{tpu_custom_call.1} parent=23 // pred_fallthru
          _
        // Predicated region
        $region85: #{tpu_custom_call.1} parent=23 // pred_check
          %p737 = pneg %p501
        $region86: #{tpu_custom_call.1} parent=23 // pred_check_branch
          %739 = sbr.rel (%p737) target = $region88
        $region87: #{tpu_custom_call.1} parent=23 // pred_region
          %s740 = sand.u32 %s27, 1
          %s741 = scalar_lea.sflag [#allocation4], %s740
          %s742 = sand.u32 %s491, 1
          %s743 = scalar_lea.vmem [#allocation12], %s742
          %745 = vsyncadd %s741, 0
          %s746 = scalar_lea.hbm %s17, %s35
          %s748 = sshll.u32 %s746, 4
          %s749 = int_to_ptr.hbm [resolvable:$true] %s748
          %s750 = sshll.u32 %s743, 4
          %s751 = int_to_ptr.vmem [resolvable:$true] %s750
          %753 = dma.hbm_to_vmem [thread:$0]  %s749, 16, %s751, %s741
        $region88: #{tpu_custom_call.1} parent=23 // pred_fallthru
          _
      $region24: #{tpu_custom_call.1} parent=5 // pred_fallthru
        _
      %p754 = scmp.le.s32.totalorder 1, %s27
      %p755 = scmp.lt.s32.totalorder %s27, 3
      %p756 = pnand %p754, %p755
      %p757 = pneg %p756
      // Predicated region
      $region89: #{tpu_custom_call.1} parent=5 // pred_check
        _
      $region90: #{tpu_custom_call.1} parent=5 // pred_check_branch
        %759 = sbr.rel (%p756) target = $region92
      $region91: #{tpu_custom_call.1} parent=5 // pred_region
        %s760 = ssub.s32 %s27, 1
        // Predicated region
        $region93: #{tpu_custom_call.1} parent=91 // pred_check
          %p761 = pneg %p65
        $region94: #{tpu_custom_call.1} parent=91 // pred_check_branch
          %763 = sbr.rel (%p761) target = $region96
        $region95: #{tpu_custom_call.1} parent=91 // pred_region
          %765 = dma.done [#allocation4], 256
        $region96: #{tpu_custom_call.1} parent=91 // pred_fallthru
          _
        // Predicated region
        $region97: #{tpu_custom_call.1} parent=91 // pred_check
          %p766 = pneg %p91
        $region98: #{tpu_custom_call.1} parent=91 // pred_check_branch
          %768 = sbr.rel (%p766) target = $region100
        $region99: #{tpu_custom_call.1} parent=91 // pred_region
          %770 = dma.done [#allocation7], 32
        $region100: #{tpu_custom_call.1} parent=91 // pred_fallthru
          _
        %s771 = sand.u32 %s32, 1
        %s772 = scalar_lea.sflag [#allocation4], %s771
        %s773 = sand.u32 %s182, 1
        %s774 = scalar_lea.vmem [#allocation8], %s773
        // Predicated region
        $region101: #{tpu_custom_call.1} parent=91 // pred_check
          %p775 = pneg %p195
        $region102: #{tpu_custom_call.1} parent=91 // pred_check_branch
          %777 = sbr.rel (%p775) target = $region104
        $region103: #{tpu_custom_call.1} parent=91 // pred_region
          %779 = dma.done %s772, 16
        $region104: #{tpu_custom_call.1} parent=91 // pred_fallthru
          _
        %s780 = sand.u32 %s32, 1
        %s781 = scalar_lea.sflag [#allocation4], %s780
        %s782 = sand.u32 %s260, 1
        %s783 = smul.addr %s782, 32
        %s784 = scalar_lea.vmem [#allocation9], %s783
        // Predicated region
        $region105: #{tpu_custom_call.1} parent=91 // pred_check
          %p785 = pneg %p273
        $region106: #{tpu_custom_call.1} parent=91 // pred_check_branch
          %787 = sbr.rel (%p785) target = $region108
        $region107: #{tpu_custom_call.1} parent=91 // pred_region
          %789 = dma.done %s781, 512
        $region108: #{tpu_custom_call.1} parent=91 // pred_fallthru
          _
        %s790 = sand.u32 %s32, 1
        %s791 = scalar_lea.sflag [#allocation4], %s790
        %s792 = sand.u32 %s338, 1
        %s793 = scalar_lea.vmem [#allocation10], %s792
        // Predicated region
        $region109: #{tpu_custom_call.1} parent=91 // pred_check
          %p794 = pneg %p351
        $region110: #{tpu_custom_call.1} parent=91 // pred_check_branch
          %796 = sbr.rel (%p794) target = $region112
        $region111: #{tpu_custom_call.1} parent=91 // pred_region
          %798 = dma.done %s791, 16
        $region112: #{tpu_custom_call.1} parent=91 // pred_fallthru
          _
        %s799 = sand.u32 %s32, 1
        %s800 = scalar_lea.sflag [#allocation4], %s799
        %s801 = sand.u32 %s364, 1
        %s802 = smul.addr %s801, 32
        %s803 = scalar_lea.vmem [#allocation11], %s802
        // Predicated region
        $region113: #{tpu_custom_call.1} parent=91 // pred_check
          %p804 = pneg %p377
        $region114: #{tpu_custom_call.1} parent=91 // pred_check_branch
          %806 = sbr.rel (%p804) target = $region116
        $region115: #{tpu_custom_call.1} parent=91 // pred_region
          %808 = dma.done %s800, 512
        $region116: #{tpu_custom_call.1} parent=91 // pred_fallthru
          _
        %s809 = sand.u32 %s32, 1
        %s810 = scalar_lea.sflag [#allocation4], %s809
        %s811 = sand.u32 %s494, 1
        %s812 = scalar_lea.vmem [#allocation12], %s811
        // Predicated region
        $region117: #{tpu_custom_call.1} parent=91 // pred_check
          %p813 = pneg %p507
        $region118: #{tpu_custom_call.1} parent=91 // pred_check_branch
          %815 = sbr.rel (%p813) target = $region120
        $region119: #{tpu_custom_call.1} parent=91 // pred_region
          %817 = dma.done %s810, 16
        $region120: #{tpu_custom_call.1} parent=91 // pred_fallthru
          _
        %p818 = pneg %p65
        %p819 = pneg %p62
        %p820 = pneg %p91
        %p821 = pneg %p88
        %p822 = scmp.lt.s32.totalorder %s37, 1
        %s823 = scalar_select %p822, %s37, 1
        %s824 = smul.addr %s823, 4
        %s825 = smul.addr %s824, 8
        %s826 = scalar_lea.vmem %s2, %s825
        %p827 = pneg %p117
        %p828 = pneg %p114
        %p829 = scmp.lt.s32.totalorder %s37, 1
        %s830 = scalar_select %p829, %s37, 1
        %s831 = scalar_lea.vmem %s3, %s830
        %p832 = pneg %p143
        %p833 = pneg %p140
        %p834 = scmp.lt.s32.totalorder %s37, 1
        %s835 = scalar_select %p834, %s37, 1
        %s836 = smul.addr %s835, 4
        %s837 = smul.addr %s836, 8
        %s838 = scalar_lea.vmem %s4, %s837
        %p839 = pneg %p169
        %p840 = pneg %p166
        %s841 = sand.u32 %s32, 1
        %s842 = scalar_lea.sflag [#allocation4], %s841
        %s843 = sand.u32 %s182, 1
        %s844 = scalar_lea.vmem [#allocation8], %s843
        %p845 = pneg %p195
        %p846 = pneg %p192
        %p847 = scmp.lt.s32.totalorder %s37, 1
        %s848 = scalar_select %p847, %s37, 1
        %s849 = smul.addr %s848, 4
        %s850 = smul.addr %s849, 8
        %s851 = scalar_lea.vmem %s6, %s850
        %p852 = pneg %p221
        %p853 = pneg %p218
        %p854 = scmp.lt.s32.totalorder %s37, 1
        %s855 = scalar_select %p854, %s37, 1
        %s856 = scalar_lea.vmem %s7, %s855
        %p857 = pneg %p247
        %p858 = pneg %p244
        %s859 = sand.u32 %s32, 1
        %s860 = scalar_lea.sflag [#allocation4], %s859
        %s861 = sand.u32 %s260, 1
        %s862 = smul.addr %s861, 32
        %s863 = scalar_lea.vmem [#allocation9], %s862
        %p864 = pneg %p273
        %p865 = pneg %p270
        %p866 = scmp.lt.s32.totalorder %s37, 1
        %s867 = scalar_select %p866, %s37, 1
        %s868 = scalar_lea.vmem %s9, %s867
        %p869 = pneg %p299
        %p870 = pneg %p296
        %p871 = scmp.lt.s32.totalorder %s37, 1
        %s872 = scalar_select %p871, %s37, 1
        %s873 = scalar_lea.vmem %s10, %s872
        %p874 = pneg %p325
        %p875 = pneg %p322
        %s876 = sand.u32 %s32, 1
        %s877 = scalar_lea.sflag [#allocation4], %s876
        %s878 = sand.u32 %s338, 1
        %s879 = scalar_lea.vmem [#allocation10], %s878
        %p880 = pneg %p351
        %p881 = pneg %p348
        %s882 = sand.u32 %s32, 1
        %s883 = scalar_lea.sflag [#allocation4], %s882
        %s884 = sand.u32 %s364, 1
        %s885 = smul.addr %s884, 32
        %s886 = scalar_lea.vmem [#allocation11], %s885
        %p887 = pneg %p377
        %p888 = pneg %p374
        %p889 = scmp.lt.s32.totalorder %s37, 1
        %s890 = scalar_select %p889, %s37, 1
        %s891 = scalar_lea.vmem %s13, %s890
        %p892 = pneg %p403
        %p893 = pneg %p400
        %p894 = scmp.lt.s32.totalorder %s37, 1
        %s895 = scalar_select %p894, %s37, 1
        %s896 = smul.addr %s895, 8
        %s897 = smul.addr %s896, 8
        %s898 = scalar_lea.vmem %s14, %s897
        %p899 = pneg %p429
        %p900 = pneg %p426
        %p901 = scmp.lt.s32.totalorder %s37, 1
        %s902 = scalar_select %p901, %s37, 1
        %s903 = scalar_lea.vmem %s15, %s902
        %p904 = pneg %p455
        %p905 = pneg %p452
        %p906 = scmp.lt.s32.totalorder %s37, 1
        %s907 = scalar_select %p906, %s37, 1
        %s908 = scalar_lea.vmem %s16, %s907
        %p909 = pneg %p481
        %p910 = pneg %p478
        %s911 = sand.u32 %s32, 1
        %s912 = scalar_lea.sflag [#allocation4], %s911
        %s913 = sand.u32 %s494, 1
        %s914 = scalar_lea.vmem [#allocation12], %s913
        %p915 = pneg %p507
        %p916 = pneg %p504
        %p917 = pneg %p533
        %p918 = pneg %p530
        %s919 = smul.u32 2, %s36
        %s920 = smul.u32 2, %s36
        %p921 = scmp.lt.s32.totalorder %s37, 1
        %s922 = scalar_select %p921, %s37, 1
        %s923 = smul.addr %s922, 4
        %s924 = smul.addr %s923, 8
        %s925 = scalar_lea.vmem %s2, %s924
        %p926 = scmp.lt.s32.totalorder %s37, 1
        %s927 = scalar_select %p926, %s37, 1
        %s928 = scalar_lea.vmem %s3, %s927
        %p929 = scmp.lt.s32.totalorder %s37, 1
        %s930 = scalar_select %p929, %s37, 1
        %s931 = smul.addr %s930, 4
        %s932 = smul.addr %s931, 8
        %s933 = scalar_lea.vmem %s4, %s932
        %p934 = scmp.lt.s32.totalorder %s37, 1
        %s935 = scalar_select %p934, %s37, 1
        %s936 = smul.addr %s935, 4
        %s937 = smul.addr %s936, 8
        %s938 = scalar_lea.vmem %s6, %s937
        %p939 = scmp.lt.s32.totalorder %s37, 1
        %s940 = scalar_select %p939, %s37, 1
        %s941 = scalar_lea.vmem %s7, %s940
        %p942 = scmp.lt.s32.totalorder %s37, 1
        %s943 = scalar_select %p942, %s37, 1
        %s944 = scalar_lea.vmem %s9, %s943
        %p945 = scmp.lt.s32.totalorder %s37, 1
        %s946 = scalar_select %p945, %s37, 1
        %s947 = scalar_lea.vmem %s10, %s946
        %p948 = scmp.lt.s32.totalorder %s37, 1
        %s949 = scalar_select %p948, %s37, 1
        %s950 = scalar_lea.vmem %s13, %s949
        %p951 = scmp.lt.s32.totalorder %s37, 1
        %s952 = scalar_select %p951, %s37, 1
        %s953 = smul.addr %s952, 8
        %s954 = smul.addr %s953, 8
        %s955 = scalar_lea.vmem %s14, %s954
        %p956 = scmp.lt.s32.totalorder %s37, 1
        %s957 = scalar_select %p956, %s37, 1
        %s958 = scalar_lea.vmem %s15, %s957
        %p959 = scmp.lt.s32.totalorder %s37, 1
        %s960 = scalar_select %p959, %s37, 1
        %s961 = scalar_lea.vmem %s16, %s960
        %s962 = smul.u32 2, %s36
        %p963 = scmp.eq.s32.totalorder %s37, 0
        // Predicated region
        $region121: #{tpu_custom_call.1} parent=91 // pred_check
          %p964 = pneg %p963
        $region122: #{tpu_custom_call.1} parent=91 // pred_check_branch
          %966 = sbr.rel (%p964) target = $region124
        $region123: #{tpu_custom_call.1} parent=91 // pred_region
          %v967 = vld [vmem:[#allocation3] sm:$0xff]
          %v968 = vld [vmem:[#allocation3 + $0x8] sm:$0xff]
          %vm969 = vcmask 261120
          %970 = vst.msk [vmem:[#allocation13] sm:$0xff] %vm969, %v967
          %971 = vst.msk [vmem:[#allocation13 + $0x8] sm:$0xff] %vm969, %v968
        $region124: #{tpu_custom_call.1} parent=91 // pred_fallthru
          _
        %v972 = vld [vmem:[#allocation13] sm:$0xff]
        %v973 = vld [vmem:[#allocation13 + $0x8] sm:$0xff]
        %v974 = vld [vmem:[#allocation6] sm:$0x1]
        %v975 = vld [vmem:[#allocation6 + $0x1] sm:$0x1]
        %v976 = vld [vmem:[%s925] sm:$0xff]
        %v977 = vld [vmem:[%s925 + $0x8] sm:$0xff]
        %v978 = vld [vmem:[%s925 + $0x10] sm:$0xff]
        %v979 = vld [vmem:[%s925 + $0x18] sm:$0xff]
        %v980 = vld [vmem:[%s928] sm:$0x1]
        %v982 = vperm.slane %v980, 0
        %vm984 = vcmask 261120
        %v986 = vsel %vm984, %v972, 0
        %v989 = vsel %vm984, %v973, 0
        %991 = vmatpush.msra.mxu0 0.0
        %992 = vmatpush.msra.mxu0 0.0
        %993 = vmatpush.msra.mxu0 0.0
        %994 = vmatpush.msra.mxu0 0.0
        %995 = vmatpush.msra.mxu0 0.0
        %996 = vmatpush.msra.mxu0 0.0
        %997 = vmatpush.msra.mxu0 0.0
        %998 = vmatpush.msra.mxu0 0.0
        %999 = vmatpush.msra.mxu0 0.0
        %1000 = vmatpush.msra.mxu0 0.0
        %1001 = vmatpush.msra.mxu0 0.0
        %1002 = vmatpush.msra.mxu0 0.0
        %1003 = vmatpush.msra.mxu0 %v979
        %1004 = vmatpush.msra.mxu0 %v978
        %1005 = vmatpush.msra.mxu0 %v977
        %1006 = vmatpush.msra.mxu0 %v976
        %1007 = vmatmul.f32.gmra.mxu0 %v986
        %v1008 = vpop.f32.mrf.mxu0
        %v1009 = vadd.f32 %v982, %v1008
        %1010 = vmatmul.f32.gmra.mxu0 %v989
        %v1011 = vpop.f32.mrf.mxu0
        %v1012 = vadd.f32 %v982, %v1011
        %1013 = vdwg.mxu0
        %v1014 = vmul.f32 %v1009, 0.35355338
        %v1015 = vmul.f32 %v1012, 0.35355338
        %v1016 = vld [vmem:[%s933] sm:$0xff]
        %v1017 = vld [vmem:[%s933 + $0x8] sm:$0xff]
        %v1018 = vld [vmem:[%s933 + $0x10] sm:$0xff]
        %v1019 = vld [vmem:[%s933 + $0x18] sm:$0xff]
        %v1020 = vld [vmem:[%s774] sm:$0x1]
        %v1022 = vperm.slane %v1020, 0
        %1024 = vmatpush.msra.mxu0 0.0
        %1025 = vmatpush.msra.mxu0 0.0
        %1026 = vmatpush.msra.mxu0 0.0
        %1027 = vmatpush.msra.mxu0 0.0
        %1028 = vmatpush.msra.mxu0 0.0
        %1029 = vmatpush.msra.mxu0 0.0
        %1030 = vmatpush.msra.mxu0 0.0
        %1031 = vmatpush.msra.mxu0 0.0
        %1032 = vmatpush.msra.mxu0 0.0
        %1033 = vmatpush.msra.mxu0 0.0
        %1034 = vmatpush.msra.mxu0 0.0
        %1035 = vmatpush.msra.mxu0 0.0
        %1036 = vmatpush.msra.mxu0 %v1019
        %1037 = vmatpush.msra.mxu0 %v1018
        %1038 = vmatpush.msra.mxu0 %v1017
        %1039 = vmatpush.msra.mxu0 %v1016
        %1040 = vmatmul.f32.gmra.mxu0 %v986
        %v1041 = vpop.f32.mrf.mxu0
        %v1042 = vadd.f32 %v1022, %v1041
        %1043 = vmatmul.f32.gmra.mxu0 %v989
        %v1044 = vpop.f32.mrf.mxu0
        %v1045 = vadd.f32 %v1022, %v1044
        %1046 = vdwg.mxu0
        %v1047 = vld [vmem:[%s938] sm:$0xff]
        %v1048 = vld [vmem:[%s938 + $0x8] sm:$0xff]
        %v1049 = vld [vmem:[%s938 + $0x10] sm:$0xff]
        %v1050 = vld [vmem:[%s938 + $0x18] sm:$0xff]
        %v1051 = vld [vmem:[%s941] sm:$0x1]
        %v1053 = vperm.slane %v1051, 0
        %1055 = vmatpush.msra.mxu0 0.0
        %1056 = vmatpush.msra.mxu0 0.0
        %1057 = vmatpush.msra.mxu0 0.0
        %1058 = vmatpush.msra.mxu0 0.0
        %1059 = vmatpush.msra.mxu0 0.0
        %1060 = vmatpush.msra.mxu0 0.0
        %1061 = vmatpush.msra.mxu0 0.0
        %1062 = vmatpush.msra.mxu0 0.0
        %1063 = vmatpush.msra.mxu0 0.0
        %1064 = vmatpush.msra.mxu0 0.0
        %1065 = vmatpush.msra.mxu0 0.0
        %1066 = vmatpush.msra.mxu0 0.0
        %1067 = vmatpush.msra.mxu0 %v1050
        %1068 = vmatpush.msra.mxu0 %v1049
        %1069 = vmatpush.msra.mxu0 %v1048
        %1070 = vmatpush.msra.mxu0 %v1047
        %1071 = vmatmul.f32.gmra.mxu0 %v986
        %v1072 = vpop.f32.mrf.mxu0
        %v1073 = vadd.f32 %v1053, %v1072
        %1074 = vmatmul.f32.gmra.mxu0 %v989
        %v1075 = vpop.f32.mrf.mxu0
        %v1076 = vadd.f32 %v1053, %v1075
        %1077 = vdwg.mxu0
        %v1080 = vperm.slane %v974, 0
        %v1081 = vperm.slane %v975, 0
        %vm1084 = vcmask 64512
        %v1086 = vsel %vm1084, %v1014, 0
        %v1089 = vsel %vm1084, %v1042, 0
        %1091 = vmatpush.xpose.msra.mxu0 0.0
        %1092 = vmatpush.xpose.msra.mxu0 0.0
        %1093 = vmatpush.xpose.msra.mxu0 0.0
        %1094 = vmatpush.xpose.msra.mxu0 0.0
        %1095 = vmatpush.xpose.msra.mxu0 0.0
        %1096 = vmatpush.xpose.msra.mxu0 0.0
        %1097 = vmatpush.xpose.msra.mxu0 0.0
        %1098 = vmatpush.xpose.msra.mxu0 0.0
        %1099 = vmatpush.xpose.msra.mxu0 0.0
        %1100 = vmatpush.xpose.msra.mxu0 0.0
        %1101 = vmatpush.xpose.msra.mxu0 0.0
        %1102 = vmatpush.xpose.msra.mxu0 0.0
        %1103 = vmatpush.xpose.msra.mxu0 0.0
        %1104 = vmatpush.xpose.msra.mxu0 0.0
        %1105 = vmatpush.xpose.msra.mxu0 0.0
        %1106 = vmatpush.xpose.msra.mxu0 %v1089
        %1107 = vmatmul.f32.gmra.mxu0 %v1086
        %v1108 = vpop.f32.mrf.mxu0
        %v1109 = vadd.f32 %v1080, %v1108
        %1110 = vdwg.mxu0
        %v1112 = vsel %vm1084, %v1015, 0
        %v1115 = vsel %vm1084, %v1045, 0
        %1117 = vmatpush.xpose.msra.mxu0 0.0
        %1118 = vmatpush.xpose.msra.mxu0 0.0
        %1119 = vmatpush.xpose.msra.mxu0 0.0
        %1120 = vmatpush.xpose.msra.mxu0 0.0
        %1121 = vmatpush.xpose.msra.mxu0 0.0
        %1122 = vmatpush.xpose.msra.mxu0 0.0
        %1123 = vmatpush.xpose.msra.mxu0 0.0
        %1124 = vmatpush.xpose.msra.mxu0 0.0
        %1125 = vmatpush.xpose.msra.mxu0 0.0
        %1126 = vmatpush.xpose.msra.mxu0 0.0
        %1127 = vmatpush.xpose.msra.mxu0 0.0
        %1128 = vmatpush.xpose.msra.mxu0 0.0
        %1129 = vmatpush.xpose.msra.mxu0 0.0
        %1130 = vmatpush.xpose.msra.mxu0 0.0
        %1131 = vmatpush.xpose.msra.mxu0 0.0
        %1132 = vmatpush.xpose.msra.mxu0 %v1115
        %1133 = vmatmul.f32.gmra.mxu0 %v1112
        %v1134 = vpop.f32.mrf.mxu0
        %v1135 = vadd.f32 %v1081, %v1134
        %1136 = vdwg.mxu0
        %v1137 = vsel %vm1084, %v1109, -inf
        %1138 = vmax.xlane.f32.xlu0 %v1137
        %v1139 = vpop.xlane.xlu0 %1138
        %v1140 = vsel %vm1084, %v1135, -inf
        %1141 = vmax.xlane.f32.xlu0 %v1140
        %v1142 = vpop.xlane.xlu0 %1141
        %v1143 = vsub.f32 %v1109, %v1139
        %v1144 = vsub.f32 %v1135, %v1142
        %v1145 = vmul.f32 %v1143, 1.442695
        %v1146 = vpow.pop %v1145
        %v1147 = vmul.f32 %v1144, 1.442695
        %v1148 = vpow.pop %v1147
        %v1149 = vsel %vm1084, %v1146, 0.0
        %1150 = vadd.xlane.f32.xlu0 %v1149
        %v1151 = vpop.xlane.xlu0 %1150
        %v1152 = vsel %vm1084, %v1148, 0.0
        %1153 = vadd.xlane.f32.xlu0 %v1152
        %v1154 = vpop.xlane.xlu0 %1153
        %v1155 = vrcp.pop %v1151
        %v1156 = vmul.f32 %v1151, %v1155
        %v1157 = vsub.f32 1.0, %v1156
        %v1158 = vmul.f32 %v1155, %v1157
        %v1159 = vadd.f32 %v1155, %v1158
        %vm1160 = vweird.f32 %v1151
        %vm1161 = vweird.f32 %v1155
        %vm1162 = vmor %vm1160, %vm1161
        %v1163 = vsel %vm1162, %v1155, %v1159
        %v1164 = vand.u32 2147483647, %v1151
        %vm1165 = vcmp.eq.f32.partialorder %v1164, 8.507059e+37
        %v1166 = vand.u32 %v1151, 2147483648
        %v1167 = vor.u32 1.1754944e-38, %v1166
        %v1168 = vsel %vm1165, %v1167, %v1163
        %v1169 = vrcp.pop %v1154
        %v1170 = vmul.f32 %v1154, %v1169
        %v1171 = vsub.f32 1.0, %v1170
        %v1172 = vmul.f32 %v1169, %v1171
        %v1173 = vadd.f32 %v1169, %v1172
        %vm1174 = vweird.f32 %v1154
        %vm1175 = vweird.f32 %v1169
        %vm1176 = vmor %vm1174, %vm1175
        %v1177 = vsel %vm1176, %v1169, %v1173
        %v1178 = vand.u32 2147483647, %v1154
        %vm1179 = vcmp.eq.f32.partialorder %v1178, 8.507059e+37
        %v1180 = vand.u32 %v1154, 2147483648
        %v1181 = vor.u32 1.1754944e-38, %v1180
        %v1182 = vsel %vm1179, %v1181, %v1177
        %v1183 = vmul.f32 %v1146, %v1168
        %v1184 = vmul.f32 %v1148, %v1182
        %v1186 = vsel %vm1084, %v1183, 0
        %1188 = vmatpush.msra.mxu0 0.0
        %1189 = vmatpush.msra.mxu0 0.0
        %1190 = vmatpush.msra.mxu0 0.0
        %1191 = vmatpush.msra.mxu0 0.0
        %1192 = vmatpush.msra.mxu0 0.0
        %1193 = vmatpush.msra.mxu0 0.0
        %1194 = vmatpush.msra.mxu0 0.0
        %1195 = vmatpush.msra.mxu0 0.0
        %1196 = vmatpush.msra.mxu0 0.0
        %1197 = vmatpush.msra.mxu0 0.0
        %1198 = vmatpush.msra.mxu0 0.0
        %1199 = vmatpush.msra.mxu0 0.0
        %1200 = vmatpush.msra.mxu0 0.0
        %1201 = vmatpush.msra.mxu0 0.0
        %1202 = vmatpush.msra.mxu0 0.0
        %1203 = vmatpush.msra.mxu0 %v1073
        %1204 = vmatmul.f32.gmra.mxu0 %v1186
        %v1205 = vpop.f32.mrf.mxu0
        %v1206 = vadd.f32 0.0, %v1205
        %1207 = vdwg.mxu0
        %v1209 = vsel %vm1084, %v1184, 0
        %1211 = vmatpush.msra.mxu0 0.0
        %1212 = vmatpush.msra.mxu0 0.0
        %1213 = vmatpush.msra.mxu0 0.0
        %1214 = vmatpush.msra.mxu0 0.0
        %1215 = vmatpush.msra.mxu0 0.0
        %1216 = vmatpush.msra.mxu0 0.0
        %1217 = vmatpush.msra.mxu0 0.0
        %1218 = vmatpush.msra.mxu0 0.0
        %1219 = vmatpush.msra.mxu0 0.0
        %1220 = vmatpush.msra.mxu0 0.0
        %1221 = vmatpush.msra.mxu0 0.0
        %1222 = vmatpush.msra.mxu0 0.0
        %1223 = vmatpush.msra.mxu0 0.0
        %1224 = vmatpush.msra.mxu0 0.0
        %1225 = vmatpush.msra.mxu0 0.0
        %1226 = vmatpush.msra.mxu0 %v1076
        %1227 = vmatmul.f32.gmra.mxu0 %v1209
        %v1228 = vpop.f32.mrf.mxu0
        %v1229 = vadd.f32 0.0, %v1228
        %1230 = vdwg.mxu0
        %1231 = vst.msk [vmem:[#allocation2] sm:$0xff] %vm1084, %v1206
        %1232 = vst.msk [vmem:[#allocation2 + $0x8] sm:$0xff] %vm1084, %v1229
        %1233 = vrot.lane.b32.xlu0 %v1014, 120
        %v1234 = vpop.permute.xlu0 %1233
        %1235 = vrot.lane.b32.xlu0 %v1042, 120
        %v1236 = vpop.permute.xlu0 %1235
        %v1237 = vsel %vm1084, %v1234, 0
        %v1239 = vsel %vm1084, %v1236, 0
        %1241 = vmatpush.xpose.msra.mxu0 0.0
        %1242 = vmatpush.xpose.msra.mxu0 0.0
        %1243 = vmatpush.xpose.msra.mxu0 0.0
        %1244 = vmatpush.xpose.msra.mxu0 0.0
        %1245 = vmatpush.xpose.msra.mxu0 0.0
        %1246 = vmatpush.xpose.msra.mxu0 0.0
        %1247 = vmatpush.xpose.msra.mxu0 0.0
        %1248 = vmatpush.xpose.msra.mxu0 0.0
        %1249 = vmatpush.xpose.msra.mxu0 0.0
        %1250 = vmatpush.xpose.msra.mxu0 0.0
        %1251 = vmatpush.xpose.msra.mxu0 0.0
        %1252 = vmatpush.xpose.msra.mxu0 0.0
        %1253 = vmatpush.xpose.msra.mxu0 0.0
        %1254 = vmatpush.xpose.msra.mxu0 0.0
        %1255 = vmatpush.xpose.msra.mxu0 0.0
        %1256 = vmatpush.xpose.msra.mxu0 %v1239
        %1257 = vmatmul.f32.gmra.mxu0 %v1237
        %v1258 = vpop.f32.mrf.mxu0
        %v1259 = vadd.f32 %v1080, %v1258
        %1260 = vdwg.mxu0
        %1261 = vrot.lane.b32.xlu0 %v1015, 120
        %v1262 = vpop.permute.xlu0 %1261
        %1263 = vrot.lane.b32.xlu0 %v1045, 120
        %v1264 = vpop.permute.xlu0 %1263
        %v1265 = vsel %vm1084, %v1262, 0
        %v1267 = vsel %vm1084, %v1264, 0
        %1269 = vmatpush.xpose.msra.mxu0 0.0
        %1270 = vmatpush.xpose.msra.mxu0 0.0
        %1271 = vmatpush.xpose.msra.mxu0 0.0
        %1272 = vmatpush.xpose.msra.mxu0 0.0
        %1273 = vmatpush.xpose.msra.mxu0 0.0
        %1274 = vmatpush.xpose.msra.mxu0 0.0
        %1275 = vmatpush.xpose.msra.mxu0 0.0
        %1276 = vmatpush.xpose.msra.mxu0 0.0
        %1277 = vmatpush.xpose.msra.mxu0 0.0
        %1278 = vmatpush.xpose.msra.mxu0 0.0
        %1279 = vmatpush.xpose.msra.mxu0 0.0
        %1280 = vmatpush.xpose.msra.mxu0 0.0
        %1281 = vmatpush.xpose.msra.mxu0 0.0
        %1282 = vmatpush.xpose.msra.mxu0 0.0
        %1283 = vmatpush.xpose.msra.mxu0 0.0
        %1284 = vmatpush.xpose.msra.mxu0 %v1267
        %1285 = vmatmul.f32.gmra.mxu0 %v1265
        %v1286 = vpop.f32.mrf.mxu0
        %v1287 = vadd.f32 %v1081, %v1286
        %1288 = vdwg.mxu0
        %v1289 = vsel %vm1084, %v1259, -inf
        %1290 = vmax.xlane.f32.xlu0 %v1289
        %v1291 = vpop.xlane.xlu0 %1290
        %v1292 = vsel %vm1084, %v1287, -inf
        %1293 = vmax.xlane.f32.xlu0 %v1292
        %v1294 = vpop.xlane.xlu0 %1293
        %v1295 = vsub.f32 %v1259, %v1291
        %v1296 = vsub.f32 %v1287, %v1294
        %v1297 = vmul.f32 %v1295, 1.442695
        %v1298 = vpow.pop %v1297
        %v1299 = vmul.f32 %v1296, 1.442695
        %v1300 = vpow.pop %v1299
        %v1301 = vsel %vm1084, %v1298, 0.0
        %1302 = vadd.xlane.f32.xlu0 %v1301
        %v1303 = vpop.xlane.xlu0 %1302
        %v1304 = vsel %vm1084, %v1300, 0.0
        %1305 = vadd.xlane.f32.xlu0 %v1304
        %v1306 = vpop.xlane.xlu0 %1305
        %v1307 = vrcp.pop %v1303
        %v1308 = vmul.f32 %v1303, %v1307
        %v1309 = vsub.f32 1.0, %v1308
        %v1310 = vmul.f32 %v1307, %v1309
        %v1311 = vadd.f32 %v1307, %v1310
        %vm1312 = vweird.f32 %v1303
        %vm1313 = vweird.f32 %v1307
        %vm1314 = vmor %vm1312, %vm1313
        %v1315 = vsel %vm1314, %v1307, %v1311
        %v1316 = vand.u32 2147483647, %v1303
        %vm1317 = vcmp.eq.f32.partialorder %v1316, 8.507059e+37
        %v1318 = vand.u32 %v1303, 2147483648
        %v1319 = vor.u32 1.1754944e-38, %v1318
        %v1320 = vsel %vm1317, %v1319, %v1315
        %v1321 = vrcp.pop %v1306
        %v1322 = vmul.f32 %v1306, %v1321
        %v1323 = vsub.f32 1.0, %v1322
        %v1324 = vmul.f32 %v1321, %v1323
        %v1325 = vadd.f32 %v1321, %v1324
        %vm1326 = vweird.f32 %v1306
        %vm1327 = vweird.f32 %v1321
        %vm1328 = vmor %vm1326, %vm1327
        %v1329 = vsel %vm1328, %v1321, %v1325
        %v1330 = vand.u32 2147483647, %v1306
        %vm1331 = vcmp.eq.f32.partialorder %v1330, 8.507059e+37
        %v1332 = vand.u32 %v1306, 2147483648
        %v1333 = vor.u32 1.1754944e-38, %v1332
        %v1334 = vsel %vm1331, %v1333, %v1329
        %v1335 = vmul.f32 %v1298, %v1320
        %v1336 = vmul.f32 %v1300, %v1334
        %1338 = vrot.lane.b32.xlu0 %v1073, 120
        %v1339 = vpop.permute.xlu0 %1338
        %v1342 = vsel %vm1084, %v1335, 0
        %1344 = vmatpush.msra.mxu0 0.0
        %1345 = vmatpush.msra.mxu0 0.0
        %1346 = vmatpush.msra.mxu0 0.0
        %1347 = vmatpush.msra.mxu0 0.0
        %1348 = vmatpush.msra.mxu0 0.0
        %1349 = vmatpush.msra.mxu0 0.0
        %1350 = vmatpush.msra.mxu0 0.0
        %1351 = vmatpush.msra.mxu0 0.0
        %1352 = vmatpush.msra.mxu0 0.0
        %1353 = vmatpush.msra.mxu0 0.0
        %1354 = vmatpush.msra.mxu0 0.0
        %1355 = vmatpush.msra.mxu0 0.0
        %1356 = vmatpush.msra.mxu0 0.0
        %1357 = vmatpush.msra.mxu0 0.0
        %1358 = vmatpush.msra.mxu0 0.0
        %1359 = vmatpush.msra.mxu0 %v1339
        %1360 = vmatmul.f32.gmra.mxu0 %v1342
        %v1361 = vpop.f32.mrf.mxu0
        %v1362 = vadd.f32 0.0, %v1361
        %1363 = vdwg.mxu0
        %1365 = vrot.lane.b32.xlu0 %v1076, 120
        %v1366 = vpop.permute.xlu0 %1365
        %v1369 = vsel %vm1084, %v1336, 0
        %1371 = vmatpush.msra.mxu0 0.0
        %1372 = vmatpush.msra.mxu0 0.0
        %1373 = vmatpush.msra.mxu0 0.0
        %1374 = vmatpush.msra.mxu0 0.0
        %1375 = vmatpush.msra.mxu0 0.0
        %1376 = vmatpush.msra.mxu0 0.0
        %1377 = vmatpush.msra.mxu0 0.0
        %1378 = vmatpush.msra.mxu0 0.0
        %1379 = vmatpush.msra.mxu0 0.0
        %1380 = vmatpush.msra.mxu0 0.0
        %1381 = vmatpush.msra.mxu0 0.0
        %1382 = vmatpush.msra.mxu0 0.0
        %1383 = vmatpush.msra.mxu0 0.0
        %1384 = vmatpush.msra.mxu0 0.0
        %1385 = vmatpush.msra.mxu0 0.0
        %1386 = vmatpush.msra.mxu0 %v1366
        %1387 = vmatmul.f32.gmra.mxu0 %v1369
        %v1388 = vpop.f32.mrf.mxu0
        %v1389 = vadd.f32 0.0, %v1388
        %1390 = vdwg.mxu0
        %1393 = vrot.lane.b32.xlu0 %v1362, 8
        %v1394 = vpop.permute.xlu0 %1393
        %1395 = vrot.lane.b32.xlu0 %v1389, 8
        %v1396 = vpop.permute.xlu0 %1395
        %vm1399 = vcmask 130112
        %1400 = vst.msk [vmem:[#allocation2] sm:$0xff] %vm1399, %v1394
        %1401 = vst.msk [vmem:[#allocation2 + $0x8] sm:$0xff] %vm1399, %v1396
        %1402 = vrot.lane.b32.xlu0 %v1014, 112
        %v1403 = vpop.permute.xlu0 %1402
        %1404 = vrot.lane.b32.xlu0 %v1042, 112
        %v1405 = vpop.permute.xlu0 %1404
        %v1406 = vsel %vm1084, %v1403, 0
        %v1408 = vsel %vm1084, %v1405, 0
        %1410 = vmatpush.xpose.msra.mxu0 0.0
        %1411 = vmatpush.xpose.msra.mxu0 0.0
        %1412 = vmatpush.xpose.msra.mxu0 0.0
        %1413 = vmatpush.xpose.msra.mxu0 0.0
        %1414 = vmatpush.xpose.msra.mxu0 0.0
        %1415 = vmatpush.xpose.msra.mxu0 0.0
        %1416 = vmatpush.xpose.msra.mxu0 0.0
        %1417 = vmatpush.xpose.msra.mxu0 0.0
        %1418 = vmatpush.xpose.msra.mxu0 0.0
        %1419 = vmatpush.xpose.msra.mxu0 0.0
        %1420 = vmatpush.xpose.msra.mxu0 0.0
        %1421 = vmatpush.xpose.msra.mxu0 0.0
        %1422 = vmatpush.xpose.msra.mxu0 0.0
        %1423 = vmatpush.xpose.msra.mxu0 0.0
        %1424 = vmatpush.xpose.msra.mxu0 0.0
        %1425 = vmatpush.xpose.msra.mxu0 %v1408
        %1426 = vmatmul.f32.gmra.mxu0 %v1406
        %v1427 = vpop.f32.mrf.mxu0
        %v1428 = vadd.f32 %v1080, %v1427
        %1429 = vdwg.mxu0
        %1430 = vrot.lane.b32.xlu0 %v1015, 112
        %v1431 = vpop.permute.xlu0 %1430
        %1432 = vrot.lane.b32.xlu0 %v1045, 112
        %v1433 = vpop.permute.xlu0 %1432
        %v1434 = vsel %vm1084, %v1431, 0
        %v1436 = vsel %vm1084, %v1433, 0
        %1438 = vmatpush.xpose.msra.mxu0 0.0
        %1439 = vmatpush.xpose.msra.mxu0 0.0
        %1440 = vmatpush.xpose.msra.mxu0 0.0
        %1441 = vmatpush.xpose.msra.mxu0 0.0
        %1442 = vmatpush.xpose.msra.mxu0 0.0
        %1443 = vmatpush.xpose.msra.mxu0 0.0
        %1444 = vmatpush.xpose.msra.mxu0 0.0
        %1445 = vmatpush.xpose.msra.mxu0 0.0
        %1446 = vmatpush.xpose.msra.mxu0 0.0
        %1447 = vmatpush.xpose.msra.mxu0 0.0
        %1448 = vmatpush.xpose.msra.mxu0 0.0
        %1449 = vmatpush.xpose.msra.mxu0 0.0
        %1450 = vmatpush.xpose.msra.mxu0 0.0
        %1451 = vmatpush.xpose.msra.mxu0 0.0
        %1452 = vmatpush.xpose.msra.mxu0 0.0
        %1453 = vmatpush.xpose.msra.mxu0 %v1436
        %1454 = vmatmul.f32.gmra.mxu0 %v1434
        %v1455 = vpop.f32.mrf.mxu0
        %v1456 = vadd.f32 %v1081, %v1455
        %1457 = vdwg.mxu0
        %v1458 = vsel %vm1084, %v1428, -inf
        %1459 = vmax.xlane.f32.xlu0 %v1458
        %v1460 = vpop.xlane.xlu0 %1459
        %v1461 = vsel %vm1084, %v1456, -inf
        %1462 = vmax.xlane.f32.xlu0 %v1461
        %v1463 = vpop.xlane.xlu0 %1462
        %v1464 = vsub.f32 %v1428, %v1460
        %v1465 = vsub.f32 %v1456, %v1463
        %v1466 = vmul.f32 %v1464, 1.442695
        %v1467 = vpow.pop %v1466
        %v1468 = vmul.f32 %v1465, 1.442695
        %v1469 = vpow.pop %v1468
        %v1470 = vsel %vm1084, %v1467, 0.0
        %1471 = vadd.xlane.f32.xlu0 %v1470
        %v1472 = vpop.xlane.xlu0 %1471
        %v1473 = vsel %vm1084, %v1469, 0.0
        %1474 = vadd.xlane.f32.xlu0 %v1473
        %v1475 = vpop.xlane.xlu0 %1474
        %v1476 = vrcp.pop %v1472
        %v1477 = vmul.f32 %v1472, %v1476
        %v1478 = vsub.f32 1.0, %v1477
        %v1479 = vmul.f32 %v1476, %v1478
        %v1480 = vadd.f32 %v1476, %v1479
        %vm1481 = vweird.f32 %v1472
        %vm1482 = vweird.f32 %v1476
        %vm1483 = vmor %vm1481, %vm1482
        %v1484 = vsel %vm1483, %v1476, %v1480
        %v1485 = vand.u32 2147483647, %v1472
        %vm1486 = vcmp.eq.f32.partialorder %v1485, 8.507059e+37
        %v1487 = vand.u32 %v1472, 2147483648
        %v1488 = vor.u32 1.1754944e-38, %v1487
        %v1489 = vsel %vm1486, %v1488, %v1484
        %v1490 = vrcp.pop %v1475
        %v1491 = vmul.f32 %v1475, %v1490
        %v1492 = vsub.f32 1.0, %v1491
        %v1493 = vmul.f32 %v1490, %v1492
        %v1494 = vadd.f32 %v1490, %v1493
        %vm1495 = vweird.f32 %v1475
        %vm1496 = vweird.f32 %v1490
        %vm1497 = vmor %vm1495, %vm1496
        %v1498 = vsel %vm1497, %v1490, %v1494
        %v1499 = vand.u32 2147483647, %v1475
        %vm1500 = vcmp.eq.f32.partialorder %v1499, 8.507059e+37
        %v1501 = vand.u32 %v1475, 2147483648
        %v1502 = vor.u32 1.1754944e-38, %v1501
        %v1503 = vsel %vm1500, %v1502, %v1498
        %v1504 = vmul.f32 %v1467, %v1489
        %v1505 = vmul.f32 %v1469, %v1503
        %1506 = vrot.lane.b32.xlu0 %v1073, 112
        %v1507 = vpop.permute.xlu0 %1506
        %v1510 = vsel %vm1084, %v1504, 0
        %1512 = vmatpush.msra.mxu0 0.0
        %1513 = vmatpush.msra.mxu0 0.0
        %1514 = vmatpush.msra.mxu0 0.0
        %1515 = vmatpush.msra.mxu0 0.0
        %1516 = vmatpush.msra.mxu0 0.0
        %1517 = vmatpush.msra.mxu0 0.0
        %1518 = vmatpush.msra.mxu0 0.0
        %1519 = vmatpush.msra.mxu0 0.0
        %1520 = vmatpush.msra.mxu0 0.0
        %1521 = vmatpush.msra.mxu0 0.0
        %1522 = vmatpush.msra.mxu0 0.0
        %1523 = vmatpush.msra.mxu0 0.0
        %1524 = vmatpush.msra.mxu0 0.0
        %1525 = vmatpush.msra.mxu0 0.0
        %1526 = vmatpush.msra.mxu0 0.0
        %1527 = vmatpush.msra.mxu0 %v1507
        %1528 = vmatmul.f32.gmra.mxu0 %v1510
        %v1529 = vpop.f32.mrf.mxu0
        %v1530 = vadd.f32 0.0, %v1529
        %1531 = vdwg.mxu0
        %1532 = vrot.lane.b32.xlu0 %v1076, 112
        %v1533 = vpop.permute.xlu0 %1532
        %v1536 = vsel %vm1084, %v1505, 0
        %1538 = vmatpush.msra.mxu0 0.0
        %1539 = vmatpush.msra.mxu0 0.0
        %1540 = vmatpush.msra.mxu0 0.0
        %1541 = vmatpush.msra.mxu0 0.0
        %1542 = vmatpush.msra.mxu0 0.0
        %1543 = vmatpush.msra.mxu0 0.0
        %1544 = vmatpush.msra.mxu0 0.0
        %1545 = vmatpush.msra.mxu0 0.0
        %1546 = vmatpush.msra.mxu0 0.0
        %1547 = vmatpush.msra.mxu0 0.0
        %1548 = vmatpush.msra.mxu0 0.0
        %1549 = vmatpush.msra.mxu0 0.0
        %1550 = vmatpush.msra.mxu0 0.0
        %1551 = vmatpush.msra.mxu0 0.0
        %1552 = vmatpush.msra.mxu0 0.0
        %1553 = vmatpush.msra.mxu0 %v1533
        %1554 = vmatmul.f32.gmra.mxu0 %v1536
        %v1555 = vpop.f32.mrf.mxu0
        %v1556 = vadd.f32 0.0, %v1555
        %1557 = vdwg.mxu0
        %1560 = vrot.lane.b32.xlu0 %v1530, 16
        %v1561 = vpop.permute.xlu0 %1560
        %1562 = vrot.lane.b32.xlu0 %v1556, 16
        %v1563 = vpop.permute.xlu0 %1562
        %vm1566 = vcmask 195712
        %1567 = vst.msk [vmem:[#allocation2] sm:$0xff] %vm1566, %v1561
        %1568 = vst.msk [vmem:[#allocation2 + $0x8] sm:$0xff] %vm1566, %v1563
        %1569 = vrot.lane.b32.xlu0 %v1014, 104
        %v1570 = vpop.permute.xlu0 %1569
        %1571 = vrot.lane.b32.xlu0 %v1042, 104
        %v1572 = vpop.permute.xlu0 %1571
        %v1573 = vsel %vm1084, %v1570, 0
        %v1575 = vsel %vm1084, %v1572, 0
        %1577 = vmatpush.xpose.msra.mxu0 0.0
        %1578 = vmatpush.xpose.msra.mxu0 0.0
        %1579 = vmatpush.xpose.msra.mxu0 0.0
        %1580 = vmatpush.xpose.msra.mxu0 0.0
        %1581 = vmatpush.xpose.msra.mxu0 0.0
        %1582 = vmatpush.xpose.msra.mxu0 0.0
        %1583 = vmatpush.xpose.msra.mxu0 0.0
        %1584 = vmatpush.xpose.msra.mxu0 0.0
        %1585 = vmatpush.xpose.msra.mxu0 0.0
        %1586 = vmatpush.xpose.msra.mxu0 0.0
        %1587 = vmatpush.xpose.msra.mxu0 0.0
        %1588 = vmatpush.xpose.msra.mxu0 0.0
        %1589 = vmatpush.xpose.msra.mxu0 0.0
        %1590 = vmatpush.xpose.msra.mxu0 0.0
        %1591 = vmatpush.xpose.msra.mxu0 0.0
        %1592 = vmatpush.xpose.msra.mxu0 %v1575
        %1593 = vmatmul.f32.gmra.mxu0 %v1573
        %v1594 = vpop.f32.mrf.mxu0
        %v1595 = vadd.f32 %v1080, %v1594
        %1596 = vdwg.mxu0
        %1597 = vrot.lane.b32.xlu0 %v1015, 104
        %v1598 = vpop.permute.xlu0 %1597
        %1599 = vrot.lane.b32.xlu0 %v1045, 104
        %v1600 = vpop.permute.xlu0 %1599
        %v1601 = vsel %vm1084, %v1598, 0
        %v1603 = vsel %vm1084, %v1600, 0
        %1605 = vmatpush.xpose.msra.mxu0 0.0
        %1606 = vmatpush.xpose.msra.mxu0 0.0
        %1607 = vmatpush.xpose.msra.mxu0 0.0
        %1608 = vmatpush.xpose.msra.mxu0 0.0
        %1609 = vmatpush.xpose.msra.mxu0 0.0
        %1610 = vmatpush.xpose.msra.mxu0 0.0
        %1611 = vmatpush.xpose.msra.mxu0 0.0
        %1612 = vmatpush.xpose.msra.mxu0 0.0
        %1613 = vmatpush.xpose.msra.mxu0 0.0
        %1614 = vmatpush.xpose.msra.mxu0 0.0
        %1615 = vmatpush.xpose.msra.mxu0 0.0
        %1616 = vmatpush.xpose.msra.mxu0 0.0
        %1617 = vmatpush.xpose.msra.mxu0 0.0
        %1618 = vmatpush.xpose.msra.mxu0 0.0
        %1619 = vmatpush.xpose.msra.mxu0 0.0
        %1620 = vmatpush.xpose.msra.mxu0 %v1603
        %1621 = vmatmul.f32.gmra.mxu0 %v1601
        %v1622 = vpop.f32.mrf.mxu0
        %v1623 = vadd.f32 %v1081, %v1622
        %1624 = vdwg.mxu0
        %v1625 = vsel %vm1084, %v1595, -inf
        %1626 = vmax.xlane.f32.xlu0 %v1625
        %v1627 = vpop.xlane.xlu0 %1626
        %v1628 = vsel %vm1084, %v1623, -inf
        %1629 = vmax.xlane.f32.xlu0 %v1628
        %v1630 = vpop.xlane.xlu0 %1629
        %v1631 = vsub.f32 %v1595, %v1627
        %v1632 = vsub.f32 %v1623, %v1630
        %v1633 = vmul.f32 %v1631, 1.442695
        %v1634 = vpow.pop %v1633
        %v1635 = vmul.f32 %v1632, 1.442695
        %v1636 = vpow.pop %v1635
        %v1637 = vsel %vm1084, %v1634, 0.0
        %1638 = vadd.xlane.f32.xlu0 %v1637
        %v1639 = vpop.xlane.xlu0 %1638
        %v1640 = vsel %vm1084, %v1636, 0.0
        %1641 = vadd.xlane.f32.xlu0 %v1640
        %v1642 = vpop.xlane.xlu0 %1641
        %v1643 = vrcp.pop %v1639
        %v1644 = vmul.f32 %v1639, %v1643
        %v1645 = vsub.f32 1.0, %v1644
        %v1646 = vmul.f32 %v1643, %v1645
        %v1647 = vadd.f32 %v1643, %v1646
        %vm1648 = vweird.f32 %v1639
        %vm1649 = vweird.f32 %v1643
        %vm1650 = vmor %vm1648, %vm1649
        %v1651 = vsel %vm1650, %v1643, %v1647
        %v1652 = vand.u32 2147483647, %v1639
        %vm1653 = vcmp.eq.f32.partialorder %v1652, 8.507059e+37
        %v1654 = vand.u32 %v1639, 2147483648
        %v1655 = vor.u32 1.1754944e-38, %v1654
        %v1656 = vsel %vm1653, %v1655, %v1651
        %v1657 = vrcp.pop %v1642
        %v1658 = vmul.f32 %v1642, %v1657
        %v1659 = vsub.f32 1.0, %v1658
        %v1660 = vmul.f32 %v1657, %v1659
        %v1661 = vadd.f32 %v1657, %v1660
        %vm1662 = vweird.f32 %v1642
        %vm1663 = vweird.f32 %v1657
        %vm1664 = vmor %vm1662, %vm1663
        %v1665 = vsel %vm1664, %v1657, %v1661
        %v1666 = vand.u32 2147483647, %v1642
        %vm1667 = vcmp.eq.f32.partialorder %v1666, 8.507059e+37
        %v1668 = vand.u32 %v1642, 2147483648
        %v1669 = vor.u32 1.1754944e-38, %v1668
        %v1670 = vsel %vm1667, %v1669, %v1665
        %v1671 = vmul.f32 %v1634, %v1656
        %v1672 = vmul.f32 %v1636, %v1670
        %1673 = vrot.lane.b32.xlu0 %v1073, 104
        %v1674 = vpop.permute.xlu0 %1673
        %v1677 = vsel %vm1084, %v1671, 0
        %1679 = vmatpush.msra.mxu0 0.0
        %1680 = vmatpush.msra.mxu0 0.0
        %1681 = vmatpush.msra.mxu0 0.0
        %1682 = vmatpush.msra.mxu0 0.0
        %1683 = vmatpush.msra.mxu0 0.0
        %1684 = vmatpush.msra.mxu0 0.0
        %1685 = vmatpush.msra.mxu0 0.0
        %1686 = vmatpush.msra.mxu0 0.0
        %1687 = vmatpush.msra.mxu0 0.0
        %1688 = vmatpush.msra.mxu0 0.0
        %1689 = vmatpush.msra.mxu0 0.0
        %1690 = vmatpush.msra.mxu0 0.0
        %1691 = vmatpush.msra.mxu0 0.0
        %1692 = vmatpush.msra.mxu0 0.0
        %1693 = vmatpush.msra.mxu0 0.0
        %1694 = vmatpush.msra.mxu0 %v1674
        %1695 = vmatmul.f32.gmra.mxu0 %v1677
        %v1696 = vpop.f32.mrf.mxu0
        %v1697 = vadd.f32 0.0, %v1696
        %1698 = vdwg.mxu0
        %1699 = vrot.lane.b32.xlu0 %v1076, 104
        %v1700 = vpop.permute.xlu0 %1699
        %v1703 = vsel %vm1084, %v1672, 0
        %1705 = vmatpush.msra.mxu0 0.0
        %1706 = vmatpush.msra.mxu0 0.0
        %1707 = vmatpush.msra.mxu0 0.0
        %1708 = vmatpush.msra.mxu0 0.0
        %1709 = vmatpush.msra.mxu0 0.0
        %1710 = vmatpush.msra.mxu0 0.0
        %1711 = vmatpush.msra.mxu0 0.0
        %1712 = vmatpush.msra.mxu0 0.0
        %1713 = vmatpush.msra.mxu0 0.0
        %1714 = vmatpush.msra.mxu0 0.0
        %1715 = vmatpush.msra.mxu0 0.0
        %1716 = vmatpush.msra.mxu0 0.0
        %1717 = vmatpush.msra.mxu0 0.0
        %1718 = vmatpush.msra.mxu0 0.0
        %1719 = vmatpush.msra.mxu0 0.0
        %1720 = vmatpush.msra.mxu0 %v1700
        %1721 = vmatmul.f32.gmra.mxu0 %v1703
        %v1722 = vpop.f32.mrf.mxu0
        %v1723 = vadd.f32 0.0, %v1722
        %1724 = vdwg.mxu0
        %1727 = vrot.lane.b32.xlu0 %v1697, 24
        %v1728 = vpop.permute.xlu0 %1727
        %1729 = vrot.lane.b32.xlu0 %v1723, 24
        %v1730 = vpop.permute.xlu0 %1729
        %vm1733 = vcmask 261312
        %1734 = vst.msk [vmem:[#allocation2] sm:$0xff] %vm1733, %v1728
        %1735 = vst.msk [vmem:[#allocation2 + $0x8] sm:$0xff] %vm1733, %v1730
        %v1736 = vld [vmem:[#allocation2] sm:$0xff]
        %v1737 = vld [vmem:[#allocation2 + $0x8] sm:$0xff]
        %v1738 = vld [vmem:[%s784] sm:$0xff]
        %v1739 = vld [vmem:[%s784 + $0x8] sm:$0xff]
        %v1740 = vld [vmem:[%s784 + $0x10] sm:$0xff]
        %v1741 = vld [vmem:[%s784 + $0x18] sm:$0xff]
        %v1742 = vld [vmem:[%s944] sm:$0x1]
        %v1744 = vperm.slane %v1742, 0
        %v1747 = vsel %vm984, %v1736, 0
        %v1750 = vsel %vm984, %v1737, 0
        %1752 = vmatpush.msra.mxu0 0.0
        %1753 = vmatpush.msra.mxu0 0.0
        %1754 = vmatpush.msra.mxu0 0.0
        %1755 = vmatpush.msra.mxu0 0.0
        %1756 = vmatpush.msra.mxu0 0.0
        %1757 = vmatpush.msra.mxu0 0.0
        %1758 = vmatpush.msra.mxu0 0.0
        %1759 = vmatpush.msra.mxu0 0.0
        %1760 = vmatpush.msra.mxu0 0.0
        %1761 = vmatpush.msra.mxu0 0.0
        %1762 = vmatpush.msra.mxu0 0.0
        %1763 = vmatpush.msra.mxu0 0.0
        %1764 = vmatpush.msra.mxu0 %v1741
        %1765 = vmatpush.msra.mxu0 %v1740
        %1766 = vmatpush.msra.mxu0 %v1739
        %1767 = vmatpush.msra.mxu0 %v1738
        %1768 = vmatmul.f32.gmra.mxu0 %v1747
        %v1769 = vpop.f32.mrf.mxu0
        %v1770 = vadd.f32 %v1744, %v1769
        %1771 = vmatmul.f32.gmra.mxu0 %v1750
        %v1772 = vpop.f32.mrf.mxu0
        %v1773 = vadd.f32 %v1744, %v1772
        %1774 = vdwg.mxu0
        %v1775 = vadd.f32 %v972, %v1770
        %v1776 = vadd.f32 %v973, %v1773
        %v1777 = vld [vmem:[%s947] sm:$0x1]
        %v1778 = vld [vmem:[%s793] sm:$0x1]
        %1780 = vset.pattern.permute.xlu0 0
        %1781 = vperm.xlu0 %1780, %v1775
        %v1782 = vpop.permute.xlu0 %1781
        %1785 = vset.pattern.permute.xlu0 0
        %1786 = vperm.xlu0 %1785, %v1776
        %v1787 = vpop.permute.xlu0 %1786
        %v1789 = vsub.f32 %v1775, %v1782
        %v1790 = vsub.f32 %v1776, %v1787
        %v1791 = vsel %vm984, %v1789, 0.0
        %1792 = vadd.xlane.f32.xlu0 %v1791
        %v1793 = vpop.xlane.xlu0 %1792
        %v1794 = vsel %vm984, %v1790, 0.0
        %1795 = vadd.xlane.f32.xlu0 %v1794
        %v1796 = vpop.xlane.xlu0 %1795
        %v1797 = vmul.f32 %v1793, 0.03125
        %v1798 = vmul.f32 %v1796, 0.03125
        %v1799 = vmul.f32 %v1789, %v1789
        %v1800 = vmul.f32 %v1790, %v1790
        %v1801 = vsel %vm984, %v1799, 0.0
        %1802 = vadd.xlane.f32.xlu0 %v1801
        %v1803 = vpop.xlane.xlu0 %1802
        %v1804 = vsel %vm984, %v1800, 0.0
        %1805 = vadd.xlane.f32.xlu0 %v1804
        %v1806 = vpop.xlane.xlu0 %1805
        %v1807 = vmul.f32 %v1803, 0.03125
        %v1808 = vmul.f32 %v1806, 0.03125
        %v1809 = vmul.f32 %v1797, %v1797
        %v1810 = vmul.f32 %v1798, %v1798
        %v1811 = vsub.f32 %v1807, %v1809
        %v1812 = vsub.f32 %v1808, %v1810
        %v1813 = vsub.f32 %v1789, %v1797
        %v1814 = vsub.f32 %v1790, %v1798
        %v1815 = vadd.f32 %v1811, 1e-05
        %v1816 = vadd.f32 %v1812, 1e-05
        %v1817 = vrsqrt.pop %v1815
        %v1818 = vmul.f32 %v1817, %v1815
        %v1819 = vmul.f32 %v1818, %v1817
        %v1820 = vmul.f32 0.5, %v1819
        %v1821 = vsub.f32 1.5, %v1820
        %v1822 = vmul.f32 %v1817, %v1821
        %vm1823 = vweird.f32 %v1815
        %vm1824 = vweird.f32 %v1817
        %vm1825 = vmor %vm1823, %vm1824
        %v1826 = vsel %vm1825, %v1817, %v1822
        %v1827 = vrsqrt.pop %v1816
        %v1828 = vmul.f32 %v1827, %v1816
        %v1829 = vmul.f32 %v1828, %v1827
        %v1830 = vmul.f32 0.5, %v1829
        %v1831 = vsub.f32 1.5, %v1830
        %v1832 = vmul.f32 %v1827, %v1831
        %vm1833 = vweird.f32 %v1816
        %vm1834 = vweird.f32 %v1827
        %vm1835 = vmor %vm1833, %vm1834
        %v1836 = vsel %vm1835, %v1827, %v1832
        %v1837 = vmul.f32 %v1813, %v1826
        %v1838 = vmul.f32 %v1814, %v1836
        %v1840 = vperm.slane %v1777, 0
        %v1842 = vmul.f32 %v1837, %v1840
        %v1843 = vmul.f32 %v1838, %v1840
        %v1845 = vperm.slane %v1778, 0
        %v1847 = vadd.f32 %v1842, %v1845
        %v1848 = vadd.f32 %v1843, %v1845
        %v1849 = vld [vmem:[%s803] sm:$0xff]
        %v1850 = vld [vmem:[%s803 + $0x8] sm:$0xff]
        %v1851 = vld [vmem:[%s803 + $0x10] sm:$0xff]
        %v1852 = vld [vmem:[%s803 + $0x18] sm:$0xff]
        %v1853 = vld [vmem:[%s950] sm:$0x1]
        %v1855 = vperm.slane %v1853, 0
        %v1858 = vsel %vm984, %v1847, 0
        %v1861 = vsel %vm984, %v1848, 0
        %1863 = vmatpush.msra.mxu0 0.0
        %1864 = vmatpush.msra.mxu0 0.0
        %1865 = vmatpush.msra.mxu0 0.0
        %1866 = vmatpush.msra.mxu0 0.0
        %1867 = vmatpush.msra.mxu0 0.0
        %1868 = vmatpush.msra.mxu0 0.0
        %1869 = vmatpush.msra.mxu0 0.0
        %1870 = vmatpush.msra.mxu0 0.0
        %1871 = vmatpush.msra.mxu0 0.0
        %1872 = vmatpush.msra.mxu0 0.0
        %1873 = vmatpush.msra.mxu0 0.0
        %1874 = vmatpush.msra.mxu0 0.0
        %1875 = vmatpush.msra.mxu0 %v1852
        %1876 = vmatpush.msra.mxu0 %v1851
        %1877 = vmatpush.msra.mxu0 %v1850
        %1878 = vmatpush.msra.mxu0 %v1849
        %1879 = vmatmul.f32.gmra.mxu0 %v1858
        %v1880 = vpop.f32.mrf.mxu0
        %v1881 = vadd.f32 %v1855, %v1880
        %1882 = vmatmul.f32.gmra.mxu0 %v1861
        %v1883 = vpop.f32.mrf.mxu0
        %v1884 = vadd.f32 %v1855, %v1883
        %1885 = vdwg.mxu0
        %v1886 = vmax.f32 %v1881, 0.0
        %v1887 = vmax.f32 %v1884, 0.0
        %v1888 = vld [vmem:[%s955] sm:$0xff]
        %v1889 = vld [vmem:[%s955 + $0x8] sm:$0xff]
        %v1890 = vld [vmem:[%s955 + $0x10] sm:$0xff]
        %v1891 = vld [vmem:[%s955 + $0x18] sm:$0xff]
        %v1892 = vld [vmem:[%s955 + $0x20] sm:$0xff]
        %v1893 = vld [vmem:[%s955 + $0x28] sm:$0xff]
        %v1894 = vld [vmem:[%s955 + $0x30] sm:$0xff]
        %v1895 = vld [vmem:[%s955 + $0x38] sm:$0xff]
        %v1896 = vld [vmem:[%s958] sm:$0x1]
        %v1898 = vperm.slane %v1896, 0
        %vm1900 = vcmask 523264
        %v1902 = vsel %vm1900, %v1886, 0
        %v1905 = vsel %vm1900, %v1887, 0
        %1907 = vmatpush.msra.mxu0 0.0
        %1908 = vmatpush.msra.mxu0 0.0
        %1909 = vmatpush.msra.mxu0 0.0
        %1910 = vmatpush.msra.mxu0 0.0
        %1911 = vmatpush.msra.mxu0 0.0
        %1912 = vmatpush.msra.mxu0 0.0
        %1913 = vmatpush.msra.mxu0 0.0
        %1914 = vmatpush.msra.mxu0 0.0
        %1915 = vmatpush.msra.mxu0 %v1895
        %1916 = vmatpush.msra.mxu0 %v1894
        %1917 = vmatpush.msra.mxu0 %v1893
        %1918 = vmatpush.msra.mxu0 %v1892
        %1919 = vmatpush.msra.mxu0 %v1891
        %1920 = vmatpush.msra.mxu0 %v1890
        %1921 = vmatpush.msra.mxu0 %v1889
        %1922 = vmatpush.msra.mxu0 %v1888
        %1923 = vmatmul.f32.gmra.mxu0 %v1902
        %v1924 = vpop.f32.mrf.mxu0
        %v1925 = vadd.f32 %v1898, %v1924
        %1926 = vmatmul.f32.gmra.mxu0 %v1905
        %v1927 = vpop.f32.mrf.mxu0
        %v1928 = vadd.f32 %v1898, %v1927
        %1929 = vdwg.mxu0
        %v1930 = vadd.f32 %v1847, %v1925
        %v1931 = vadd.f32 %v1848, %v1928
        %v1932 = vld [vmem:[%s961] sm:$0x1]
        %v1933 = vld [vmem:[%s812] sm:$0x1]
        %1935 = vset.pattern.permute.xlu0 0
        %1936 = vperm.xlu0 %1935, %v1930
        %v1937 = vpop.permute.xlu0 %1936
        %1940 = vset.pattern.permute.xlu0 0
        %1941 = vperm.xlu0 %1940, %v1931
        %v1942 = vpop.permute.xlu0 %1941
        %v1944 = vsub.f32 %v1930, %v1937
        %v1945 = vsub.f32 %v1931, %v1942
        %v1946 = vsel %vm984, %v1944, 0.0
        %1947 = vadd.xlane.f32.xlu0 %v1946
        %v1948 = vpop.xlane.xlu0 %1947
        %v1949 = vsel %vm984, %v1945, 0.0
        %1950 = vadd.xlane.f32.xlu0 %v1949
        %v1951 = vpop.xlane.xlu0 %1950
        %v1952 = vmul.f32 %v1948, 0.03125
        %v1953 = vmul.f32 %v1951, 0.03125
        %v1954 = vmul.f32 %v1944, %v1944
        %v1955 = vmul.f32 %v1945, %v1945
        %v1956 = vsel %vm984, %v1954, 0.0
        %1957 = vadd.xlane.f32.xlu0 %v1956
        %v1958 = vpop.xlane.xlu0 %1957
        %v1959 = vsel %vm984, %v1955, 0.0
        %1960 = vadd.xlane.f32.xlu0 %v1959
        %v1961 = vpop.xlane.xlu0 %1960
        %v1962 = vmul.f32 %v1958, 0.03125
        %v1963 = vmul.f32 %v1961, 0.03125
        %v1964 = vmul.f32 %v1952, %v1952
        %v1965 = vmul.f32 %v1953, %v1953
        %v1966 = vsub.f32 %v1962, %v1964
        %v1967 = vsub.f32 %v1963, %v1965
        %v1968 = vsub.f32 %v1944, %v1952
        %v1969 = vsub.f32 %v1945, %v1953
        %v1970 = vadd.f32 %v1966, 1e-05
        %v1971 = vadd.f32 %v1967, 1e-05
        %v1972 = vrsqrt.pop %v1970
        %v1973 = vmul.f32 %v1972, %v1970
        %v1974 = vmul.f32 %v1973, %v1972
        %v1975 = vmul.f32 0.5, %v1974
        %v1976 = vsub.f32 1.5, %v1975
        %v1977 = vmul.f32 %v1972, %v1976
        %vm1978 = vweird.f32 %v1970
        %vm1979 = vweird.f32 %v1972
        %vm1980 = vmor %vm1978, %vm1979
        %v1981 = vsel %vm1980, %v1972, %v1977
        %v1982 = vrsqrt.pop %v1971
        %v1983 = vmul.f32 %v1982, %v1971
        %v1984 = vmul.f32 %v1983, %v1982
        %v1985 = vmul.f32 0.5, %v1984
        %v1986 = vsub.f32 1.5, %v1985
        %v1987 = vmul.f32 %v1982, %v1986
        %vm1988 = vweird.f32 %v1971
        %vm1989 = vweird.f32 %v1982
        %vm1990 = vmor %vm1988, %vm1989
        %v1991 = vsel %vm1990, %v1982, %v1987
        %v1992 = vmul.f32 %v1968, %v1981
        %v1993 = vmul.f32 %v1969, %v1991
        %v1995 = vperm.slane %v1932, 0
        %v1997 = vmul.f32 %v1992, %v1995
        %v1998 = vmul.f32 %v1993, %v1995
        %v2000 = vperm.slane %v1933, 0
        %v2002 = vadd.f32 %v1997, %v2000
        %v2003 = vadd.f32 %v1998, %v2000
        %2004 = vst.msk [vmem:[#allocation13] sm:$0xff] %vm984, %v2002
        %2005 = vst.msk [vmem:[#allocation13 + $0x8] sm:$0xff] %vm984, %v2003
        // Predicated region
        $region125: #{tpu_custom_call.1} parent=91 // pred_check
          %p2006 = pneg %p530
        $region126: #{tpu_custom_call.1} parent=91 // pred_check_branch
          %2008 = sbr.rel (%p2006) target = $region128
        $region127: #{tpu_custom_call.1} parent=91 // pred_region
          %s2009 = smul.u32 2, %s36
          %2011 = vsyncadd [#allocation5], 0
          %s2012 = smul.addr %s2009, 8
          %s2013 = scalar_lea.hbm %s18, %s2012
          %s2014 = sshll.u32 [#allocation13], 4
          %s2015 = int_to_ptr.vmem [resolvable:$true] %s2014
          %s2016 = sshll.u32 %s2013, 4
          %s2017 = int_to_ptr.hbm [resolvable:$true] %s2016
          %2022 = dma.vmem_to_hbm [thread:$0]  %s2015, 256, %s2017, [#allocation5], 128, 128, 8
        $region128: #{tpu_custom_call.1} parent=91 // pred_fallthru
          _
        // Predicated region
        $region129: #{tpu_custom_call.1} parent=91 // pred_check
          %p2023 = pneg %p530
        $region130: #{tpu_custom_call.1} parent=91 // pred_check_branch
          %2025 = sbr.rel (%p2023) target = $region132
        $region131: #{tpu_custom_call.1} parent=91 // pred_region
          %2027 = dma.done [#allocation5], 256
        $region132: #{tpu_custom_call.1} parent=91 // pred_fallthru
          _
      $region92: #{tpu_custom_call.1} parent=5 // pred_fallthru
        _
      %p2028 = scmp.le.s32.totalorder 2, %s27
      // Predicated region
      $region133: #{tpu_custom_call.1} parent=5 // pred_check
        %p2029 = pneg %p2028
      $region134: #{tpu_custom_call.1} parent=5 // pred_check_branch
        %2031 = sbr.rel (%p2029) target = $region136
      $region135: #{tpu_custom_call.1} parent=5 // pred_region
        %s2032 = ssub.s32 %s27, 2
      $region136: #{tpu_custom_call.1} parent=5 // pred_fallthru
        _
    $region6: #{tpu_custom_call.1} parent=1 // loop_footer
      %s31 = sadd.s32 1, %s27
    $region7: #{tpu_custom_call.1} parent=1 // loop_footer_branch
      %26 = sbr.rel target = $region3
    $region8: #{tpu_custom_call.1} parent=1 // loop_exit
      _
    %2033 = vsyncpa [#allocation4], 1
    %s2034 = scalar_lea.sflag [#allocation4], 1
    %2035 = vsyncpa %s2034, 1
    %2036 = vsyncpa [#allocation7], 1
    %2037 = vsyncpa [#allocation5], 1
    %s2038 = scalar_lea.sflag [#allocation5], 1
    %2039 = vsyncpa %s2038, 1

</llo_original>
